<compile_context>
chip_gen: v5e
topology: v5e:2x2
jax: 0.10.0
libtpu: 0.0.40
codegen_flags: <defaults>
</compile_context>

<pallas_src>
import jax
import jax.numpy as jnp
from jax.experimental import pallas as pl
from jax.experimental.pallas import tpu as pltpu

INPUT_SIZE = 11
HIDDEN_LSTM = 16
HIDDEN = 8
OUT = 3


# ----------------------------- Pallas kernel ---------------------------------
def _lstm_cell_fused(xh, c, w, b):
    """One LSTM step on fused inputs.

    xh : (B, In+H)   concat([input_t, h_prev], axis=1)
    w  : (In+H, 4H)  [W_ih ; W_hh] with gate columns permuted to [i, f, o, g]
    b  : (1, 4H)     b_ih + b_hh, same column permutation
    """
    H = HIDDEN_LSTM
    gates = jnp.dot(xh, w, preferred_element_type=jnp.float32) + b
    sfo = jax.nn.sigmoid(gates[:, :3 * H])   # one contiguous sigmoid slab (i,f,o)
    g = jnp.tanh(gates[:, 3 * H:])           # one contiguous tanh slab (g)
    i = sfo[:, 0 * H:1 * H]
    f = sfo[:, 1 * H:2 * H]
    o = sfo[:, 2 * H:3 * H]
    c_new = f * c + i * g
    h_new = o * jnp.tanh(c_new)
    return h_new, c_new


def rnn_kernel(x_ref, w1_ref, b1_ref, w2_ref, b2_ref, wd_ref, bd_ref, out_ref):
    T, B, _ = x_ref.shape
    H = HIDDEN_LSTM

    w1 = w1_ref[...]
    b1 = b1_ref[...]
    w2 = w2_ref[...]
    b2 = b2_ref[...]

    h1 = jnp.zeros((B, H), jnp.float32)
    c1 = jnp.zeros((B, H), jnp.float32)
    h2 = jnp.zeros((B, H), jnp.float32)
    c2 = jnp.zeros((B, H), jnp.float32)
    l_acc = jnp.zeros((B, H), jnp.float32)   # softmax-over-time denominator

    # Fully unrolled time loop (T is a small static constant); all recurrent
    # state is carried in vregs as loop-carried SSA values -- no VMEM scratch.
    for t in range(T):
        x_t = x_ref[t]                                                   # (B, I)
        # LSTM layer 1: fused [x_t | h1] @ [W_ih1 ; W_hh1]
        h1, c1 = _lstm_cell_fused(jnp.concatenate([x_t, h1], axis=1), c1, w1, b1)
        # TODO(synk): Dropout2d(p=0.2) is identity at inference; training-mode
        # channel dropout is not implemented.
        # LSTM layer 2: fused [h1 | h2] @ [W_ih2 ; W_hh2]
        h2, c2 = _lstm_cell_fused(jnp.concatenate([h1, h2], axis=1), c2, w2, b2)
        # Online softmax over TIME: h2 in (-1, 1) so exp cannot overflow and
        # no running max is needed.
        l_acc = l_acc + jnp.exp(h2)

    # softmax(y2, dim=time)[:, -1, :]
    y = jnp.exp(h2) / l_acc                                              # (B, H)

    # Folded dense head: Linear(16,8)->Linear(8,8)->Linear(8,3) == one affine map.
    d = jnp.dot(y, wd_ref[...], preferred_element_type=jnp.float32) + bd_ref[...]

    # softmax over features
    d = d - jnp.max(d, axis=1, keepdims=True)
    e = jnp.exp(d)
    out_ref[...] = (e / jnp.sum(e, axis=1, keepdims=True)).astype(out_ref.dtype)


# ------------------------------- wrapper --------------------------------------
def _full_spec(shape):
    n = len(shape)
    return pl.BlockSpec(shape, lambda i, _n=n: (0,) * _n)


@jax.jit
def rnn_forward(x, params):
    (w_ih1, w_hh1, b1, w_ih2, w_hh2, b2,
     wd1, bd1, wd2, bd2, wd3, bd3) = params
    B, T, I = x.shape
    assert I == INPUT_SIZE
    H = HIDDEN_LSTM

    # Permute gate columns [i, f, g, o] -> [i, f, o, g] so the kernel applies
    # sigmoid/tanh to contiguous lane slabs.
    perm = jnp.concatenate([jnp.arange(0, 2 * H),
                            jnp.arange(3 * H, 4 * H),
                            jnp.arange(2 * H, 3 * H)])
    w1 = jnp.concatenate([w_ih1, w_hh1], axis=0)[:, perm]    # (I+H, 4H)
    b1p = b1[:, perm]                                        # (1, 4H)
    w2 = jnp.concatenate([w_ih2, w_hh2], axis=0)[:, perm]    # (2H, 4H)
    b2p = b2[:, perm]

    # Fold the activation-free dense head into one matmul + bias.
    wd = wd1 @ wd2 @ wd3                                     # (H, OUT)
    bd = (bd1 @ wd2 + bd2) @ wd3 + bd3                       # (1, OUT)

    # Time-major so the kernel indexes timesteps on the leading (untiled) axis.
    # (704 bytes; negligible, fused under this jit.)
    x_tm = jnp.transpose(x, (1, 0, 2))                       # (T, B, I)

    inputs = (x_tm, w1, b1p, w2, b2p, wd, bd)

    grid_spec = pltpu.PrefetchScalarGridSpec(
        num_scalar_prefetch=0,
        grid=(1,),                                           # single invocation
        in_specs=[_full_spec(a.shape) for a in inputs],
        out_specs=_full_spec((B, OUT)),
        scratch_shapes=[],
    )

    return pl.pallas_call(
        rnn_kernel,
        out_shape=jax.ShapeDtypeStruct((B, OUT), jnp.float32),
        grid_spec=grid_spec,
        compiler_params=pltpu.CompilerParams(
            dimension_semantics=("arbitrary",)),
    )(*inputs)


# ----------------------- pure-JAX reference ----------------------------------
def _lstm_ref(x, w_ih, w_hh, b):
    H = HIDDEN_LSTM
    B = x.shape[0]

    def step(carry, x_t):
        h, c = carry
        gates = x_t @ w_ih + h @ w_hh + b
        i = jax.nn.sigmoid(gates[:, :H])
        f = jax.nn.sigmoid(gates[:, H:2 * H])
        g = jnp.tanh(gates[:, 2 * H:3 * H])
        o = jax.nn.sigmoid(gates[:, 3 * H:])
        c = f * c + i * g
        h = o * jnp.tanh(c)
        return (h, c), h

    init = (jnp.zeros((B, H), jnp.float32), jnp.zeros((B, H), jnp.float32))
    _, ys = jax.lax.scan(step, init, jnp.transpose(x, (1, 0, 2)))
    return jnp.transpose(ys, (1, 0, 2))


def ref_forward(x, params):
    (w_ih1, w_hh1, b1, w_ih2, w_hh2, b2,
     wd1, bd1, wd2, bd2, wd3, bd3) = params
    y1 = _lstm_ref(x, w_ih1, w_hh1, b1)          # dropout == identity (eval)
    y2 = _lstm_ref(y1, w_ih2, w_hh2, b2)
    s = jax.nn.softmax(y2, axis=1)[:, -1, :]     # softmax over time, last step
    d = s @ wd1 + bd1
    d = d @ wd2 + bd2
    d = d @ wd3 + bd3
    return jax.nn.softmax(d, axis=1)


# ----------------------- deterministic parameter init ------------------------
def init_params(key):
    def u(k, shape, bound):
        return jax.random.uniform(k, shape, jnp.float32, -bound, bound)

    ks = jax.random.split(key, 12)
    kL = 1.0 / (HIDDEN_LSTM ** 0.5)       # PyTorch LSTM init bound
    params = (
        u(ks[0], (INPUT_SIZE, 4 * HIDDEN_LSTM), kL),    # lstm1 W_ih^T
        u(ks[1], (HIDDEN_LSTM, 4 * HIDDEN_LSTM), kL),   # lstm1 W_hh^T
        u(ks[2], (1, 4 * HIDDEN_LSTM), kL),             # lstm1 b_ih + b_hh (combined)
        u(ks[3], (HIDDEN_LSTM, 4 * HIDDEN_LSTM), kL),   # lstm2 W_ih^T
        u(ks[4], (HIDDEN_LSTM, 4 * HIDDEN_LSTM), kL),   # lstm2 W_hh^T
        u(ks[5], (1, 4 * HIDDEN_LSTM), kL),             # lstm2 bias
        u(ks[6], (HIDDEN_LSTM, HIDDEN), 1.0 / (HIDDEN_LSTM ** 0.5)),  # dense1 W^T
        u(ks[7], (1, HIDDEN), 1.0 / (HIDDEN_LSTM ** 0.5)),            # dense1 b
        u(ks[8], (HIDDEN, HIDDEN), 1.0 / (HIDDEN ** 0.5)),            # dense2 W^T
        u(ks[9], (1, HIDDEN), 1.0 / (HIDDEN ** 0.5)),                 # dense2 b
        u(ks[10], (HIDDEN, OUT), 1.0 / (HIDDEN ** 0.5)),              # dense3 W^T
        u(ks[11], (1, OUT), 1.0 / (HIDDEN ** 0.5)),                   # dense3 b
    )
    return params


if __name__ == "__main__":
    key = jax.random.PRNGKey(0)
    kx, kp = jax.random.split(key)
    B, T = 2, 8
    x = jax.random.normal(kx, (B, T, INPUT_SIZE), jnp.float32)
    params = init_params(kp)

    out = rnn_forward(x, params)
    out = jax.block_until_ready(out)

    ref = ref_forward(x, params)

    assert out.shape == (B, OUT), out.shape
    assert bool(jnp.all(jnp.isfinite(out)))
    assert bool(jnp.allclose(jnp.sum(out, axis=1), 1.0, atol=1e-3))
    assert bool(jnp.allclose(out, ref, atol=2e-3, rtol=2e-3)), (out, ref)

    print("KERNEL_OK")
</pallas_src>

<mosaic_0001>
module attributes {stable_mosaic.version = 11 : i64} {
  func.func @rnn_kernel(%arg0: i32, %arg1: memref<8x2x11xf32, #tpu.memory_space<vmem>>, %arg2: memref<27x64xf32, #tpu.memory_space<vmem>>, %arg3: memref<1x64xf32, #tpu.memory_space<vmem>>, %arg4: memref<32x64xf32, #tpu.memory_space<vmem>>, %arg5: memref<1x64xf32, #tpu.memory_space<vmem>>, %arg6: memref<16x3xf32, #tpu.memory_space<vmem>>, %arg7: memref<1x3xf32, #tpu.memory_space<vmem>>, %arg8: memref<2x3xf32, #tpu.memory_space<vmem>>) attributes {dimension_semantics = [#tpu.dimension_semantics<arbitrary>], iteration_bounds = array<i64: 1>, scalar_prefetch = 0 : i64, scratch_operands = 0 : i64, tpu.core_type = #tpu.core_type<tc>, window_params = [{pipeline_mode = #tpu.pipeline_mode<synchronous>, transform_indices = @transform_0, window_bounds = array<i64: 8, 2, 11>}, {pipeline_mode = #tpu.pipeline_mode<synchronous>, transform_indices = @transform_1, window_bounds = array<i64: 27, 64>}, {pipeline_mode = #tpu.pipeline_mode<synchronous>, transform_indices = @transform_2, window_bounds = array<i64: 1, 64>}, {pipeline_mode = #tpu.pipeline_mode<synchronous>, transform_indices = @transform_3, window_bounds = array<i64: 32, 64>}, {pipeline_mode = #tpu.pipeline_mode<synchronous>, transform_indices = @transform_4, window_bounds = array<i64: 1, 64>}, {pipeline_mode = #tpu.pipeline_mode<synchronous>, transform_indices = @transform_5, window_bounds = array<i64: 16, 3>}, {pipeline_mode = #tpu.pipeline_mode<synchronous>, transform_indices = @transform_6, window_bounds = array<i64: 1, 3>}, {pipeline_mode = #tpu.pipeline_mode<synchronous>, transform_indices = @transform_7, window_bounds = array<i64: 2, 3>}]} {
    %c0 = arith.constant 0 : index
    %c0_0 = arith.constant 0 : index
    %0 = vector.load %arg2[%c0, %c0_0] : memref<27x64xf32, #tpu.memory_space<vmem>>, vector<27x64xf32>
    %c0_1 = arith.constant 0 : index
    %c0_2 = arith.constant 0 : index
    %1 = vector.load %arg3[%c0_1, %c0_2] : memref<1x64xf32, #tpu.memory_space<vmem>>, vector<1x64xf32>
    %c0_3 = arith.constant 0 : index
    %c0_4 = arith.constant 0 : index
    %2 = vector.load %arg4[%c0_3, %c0_4] : memref<32x64xf32, #tpu.memory_space<vmem>>, vector<32x64xf32>
    %c0_5 = arith.constant 0 : index
    %c0_6 = arith.constant 0 : index
    %3 = vector.load %arg5[%c0_5, %c0_6] : memref<1x64xf32, #tpu.memory_space<vmem>>, vector<1x64xf32>
    %cst = arith.constant 0.000000e+00 : f32
    %4 = vector.broadcast %cst : f32 to vector<2x16xf32>
    %cst_7 = arith.constant 0.000000e+00 : f32
    %5 = vector.broadcast %cst_7 : f32 to vector<2x16xf32>
    %cst_8 = arith.constant 0.000000e+00 : f32
    %6 = vector.broadcast %cst_8 : f32 to vector<2x16xf32>
    %cst_9 = arith.constant 0.000000e+00 : f32
    %7 = vector.broadcast %cst_9 : f32 to vector<2x16xf32>
    %cst_10 = arith.constant 0.000000e+00 : f32
    %8 = vector.broadcast %cst_10 : f32 to vector<2x16xf32>
    %c0_11 = arith.constant 0 : index
    %c0_12 = arith.constant 0 : index
    %c0_13 = arith.constant 0 : index
    %9 = vector.load %arg1[%c0_11, %c0_12, %c0_13] : memref<8x2x11xf32, #tpu.memory_space<vmem>>, vector<1x2x11xf32>
    %10 = vector.shape_cast %9 : vector<1x2x11xf32> to vector<2x11xf32>
    %11 = tpu.concatenate %10, %4 in 1 : vector<2x11xf32>, vector<2x16xf32> -> vector<2x27xf32>
    %cst_14 = arith.constant dense<0.000000e+00> : vector<2x64xf32>
    %12 = tpu.matmul %11, %0, %cst_14 {dimension_numbers = #tpu.dot_dimension_numbers<[1], [0], [0], [1], [0, 0, 1, 1], [], []>} : vector<2x27xf32>, vector<27x64xf32>, vector<2x64xf32> -> vector<2x64xf32>
    %13 = vector.broadcast %1 : vector<1x64xf32> to vector<2x64xf32>
    %14 = arith.addf %12, %13 : vector<2x64xf32>
    %15 = vector.extract_strided_slice %14 {offsets = [0, 0], sizes = [2, 48], strides = [1, 1]} : vector<2x64xf32> to vector<2x48xf32>
    %16 = arith.negf %15 : vector<2x48xf32>
    %17 = math.exp %16 : vector<2x48xf32>
    %cst_15 = arith.constant 1.000000e+00 : f32
    %18 = vector.broadcast %cst_15 : f32 to vector<2x48xf32>
    %19 = arith.addf %18, %17 : vector<2x48xf32>
    %20 = arith.divf %18, %19 : vector<2x48xf32>
    %21 = vector.extract_strided_slice %14 {offsets = [0, 48], sizes = [2, 16], strides = [1, 1]} : vector<2x64xf32> to vector<2x16xf32>
    %22 = math.tanh %21 : vector<2x16xf32>
    %23 = vector.extract_strided_slice %20 {offsets = [0, 0], sizes = [2, 16], strides = [1, 1]} : vector<2x48xf32> to vector<2x16xf32>
    %24 = vector.extract_strided_slice %20 {offsets = [0, 16], sizes = [2, 16], strides = [1, 1]} : vector<2x48xf32> to vector<2x16xf32>
    %25 = vector.extract_strided_slice %20 {offsets = [0, 32], sizes = [2, 16], strides = [1, 1]} : vector<2x48xf32> to vector<2x16xf32>
    %26 = arith.mulf %24, %5 : vector<2x16xf32>
    %27 = arith.mulf %23, %22 : vector<2x16xf32>
    %28 = arith.addf %26, %27 : vector<2x16xf32>
    %29 = math.tanh %28 : vector<2x16xf32>
    %30 = arith.mulf %25, %29 : vector<2x16xf32>
    %31 = tpu.concatenate %30, %6 in 1 : vector<2x16xf32>, vector<2x16xf32> -> vector<2x32xf32>
    %cst_16 = arith.constant dense<0.000000e+00> : vector<2x64xf32>
    %32 = tpu.matmul %31, %2, %cst_16 {dimension_numbers = #tpu.dot_dimension_numbers<[1], [0], [0], [1], [0, 0, 1, 1], [], []>} : vector<2x32xf32>, vector<32x64xf32>, vector<2x64xf32> -> vector<2x64xf32>
    %33 = vector.broadcast %3 : vector<1x64xf32> to vector<2x64xf32>
    %34 = arith.addf %32, %33 : vector<2x64xf32>
    %35 = vector.extract_strided_slice %34 {offsets = [0, 0], sizes = [2, 48], strides = [1, 1]} : vector<2x64xf32> to vector<2x48xf32>
    %36 = arith.negf %35 : vector<2x48xf32>
    %37 = math.exp %36 : vector<2x48xf32>
    %cst_17 = arith.constant 1.000000e+00 : f32
    %38 = vector.broadcast %cst_17 : f32 to vector<2x48xf32>
    %39 = arith.addf %38, %37 : vector<2x48xf32>
    %40 = arith.divf %38, %39 : vector<2x48xf32>
    %41 = vector.extract_strided_slice %34 {offsets = [0, 48], sizes = [2, 16], strides = [1, 1]} : vector<2x64xf32> to vector<2x16xf32>
    %42 = math.tanh %41 : vector<2x16xf32>
    %43 = vector.extract_strided_slice %40 {offsets = [0, 0], sizes = [2, 16], strides = [1, 1]} : vector<2x48xf32> to vector<2x16xf32>
    %44 = vector.extract_strided_slice %40 {offsets = [0, 16], sizes = [2, 16], strides = [1, 1]} : vector<2x48xf32> to vector<2x16xf32>
    %45 = vector.extract_strided_slice %40 {offsets = [0, 32], sizes = [2, 16], strides = [1, 1]} : vector<2x48xf32> to vector<2x16xf32>
    %46 = arith.mulf %44, %7 : vector<2x16xf32>
    %47 = arith.mulf %43, %42 : vector<2x16xf32>
    %48 = arith.addf %46, %47 : vector<2x16xf32>
    %49 = math.tanh %48 : vector<2x16xf32>
    %50 = arith.mulf %45, %49 : vector<2x16xf32>
    %51 = math.exp %50 : vector<2x16xf32>
    %52 = arith.addf %8, %51 : vector<2x16xf32>
    %c1 = arith.constant 1 : index
    %c0_18 = arith.constant 0 : index
    %c0_19 = arith.constant 0 : index
    %53 = vector.load %arg1[%c1, %c0_18, %c0_19] : memref<8x2x11xf32, #tpu.memory_space<vmem>>, vector<1x2x11xf32>
    %54 = vector.shape_cast %53 : vector<1x2x11xf32> to vector<2x11xf32>
    %55 = tpu.concatenate %54, %30 in 1 : vector<2x11xf32>, vector<2x16xf32> -> vector<2x27xf32>
    %cst_20 = arith.constant dense<0.000000e+00> : vector<2x64xf32>
    %56 = tpu.matmul %55, %0, %cst_20 {dimension_numbers = #tpu.dot_dimension_numbers<[1], [0], [0], [1], [0, 0, 1, 1], [], []>} : vector<2x27xf32>, vector<27x64xf32>, vector<2x64xf32> -> vector<2x64xf32>
    %57 = vector.broadcast %1 : vector<1x64xf32> to vector<2x64xf32>
    %58 = arith.addf %56, %57 : vector<2x64xf32>
    %59 = vector.extract_strided_slice %58 {offsets = [0, 0], sizes = [2, 48], strides = [1, 1]} : vector<2x64xf32> to vector<2x48xf32>
    %60 = arith.negf %59 : vector<2x48xf32>
    %61 = math.exp %60 : vector<2x48xf32>
    %cst_21 = arith.constant 1.000000e+00 : f32
    %62 = vector.broadcast %cst_21 : f32 to vector<2x48xf32>
    %63 = arith.addf %62, %61 : vector<2x48xf32>
    %64 = arith.divf %62, %63 : vector<2x48xf32>
    %65 = vector.extract_strided_slice %58 {offsets = [0, 48], sizes = [2, 16], strides = [1, 1]} : vector<2x64xf32> to vector<2x16xf32>
    %66 = math.tanh %65 : vector<2x16xf32>
    %67 = vector.extract_strided_slice %64 {offsets = [0, 0], sizes = [2, 16], strides = [1, 1]} : vector<2x48xf32> to vector<2x16xf32>
    %68 = vector.extract_strided_slice %64 {offsets = [0, 16], sizes = [2, 16], strides = [1, 1]} : vector<2x48xf32> to vector<2x16xf32>
    %69 = vector.extract_strided_slice %64 {offsets = [0, 32], sizes = [2, 16], strides = [1, 1]} : vector<2x48xf32> to vector<2x16xf32>
    %70 = arith.mulf %68, %28 : vector<2x16xf32>
    %71 = arith.mulf %67, %66 : vector<2x16xf32>
    %72 = arith.addf %70, %71 : vector<2x16xf32>
    %73 = math.tanh %72 : vector<2x16xf32>
    %74 = arith.mulf %69, %73 : vector<2x16xf32>
    %75 = tpu.concatenate %74, %50 in 1 : vector<2x16xf32>, vector<2x16xf32> -> vector<2x32xf32>
    %cst_22 = arith.constant dense<0.000000e+00> : vector<2x64xf32>
    %76 = tpu.matmul %75, %2, %cst_22 {dimension_numbers = #tpu.dot_dimension_numbers<[1], [0], [0], [1], [0, 0, 1, 1], [], []>} : vector<2x32xf32>, vector<32x64xf32>, vector<2x64xf32> -> vector<2x64xf32>
    %77 = vector.broadcast %3 : vector<1x64xf32> to vector<2x64xf32>
    %78 = arith.addf %76, %77 : vector<2x64xf32>
    %79 = vector.extract_strided_slice %78 {offsets = [0, 0], sizes = [2, 48], strides = [1, 1]} : vector<2x64xf32> to vector<2x48xf32>
    %80 = arith.negf %79 : vector<2x48xf32>
    %81 = math.exp %80 : vector<2x48xf32>
    %cst_23 = arith.constant 1.000000e+00 : f32
    %82 = vector.broadcast %cst_23 : f32 to vector<2x48xf32>
    %83 = arith.addf %82, %81 : vector<2x48xf32>
    %84 = arith.divf %82, %83 : vector<2x48xf32>
    %85 = vector.extract_strided_slice %78 {offsets = [0, 48], sizes = [2, 16], strides = [1, 1]} : vector<2x64xf32> to vector<2x16xf32>
    %86 = math.tanh %85 : vector<2x16xf32>
    %87 = vector.extract_strided_slice %84 {offsets = [0, 0], sizes = [2, 16], strides = [1, 1]} : vector<2x48xf32> to vector<2x16xf32>
    %88 = vector.extract_strided_slice %84 {offsets = [0, 16], sizes = [2, 16], strides = [1, 1]} : vector<2x48xf32> to vector<2x16xf32>
    %89 = vector.extract_strided_slice %84 {offsets = [0, 32], sizes = [2, 16], strides = [1, 1]} : vector<2x48xf32> to vector<2x16xf32>
    %90 = arith.mulf %88, %48 : vector<2x16xf32>
    %91 = arith.mulf %87, %86 : vector<2x16xf32>
    %92 = arith.addf %90, %91 : vector<2x16xf32>
    %93 = math.tanh %92 : vector<2x16xf32>
    %94 = arith.mulf %89, %93 : vector<2x16xf32>
    %95 = math.exp %94 : vector<2x16xf32>
    %96 = arith.addf %52, %95 : vector<2x16xf32>
    %c2 = arith.constant 2 : index
    %c0_24 = arith.constant 0 : index
    %c0_25 = arith.constant 0 : index
    %97 = vector.load %arg1[%c2, %c0_24, %c0_25] : memref<8x2x11xf32, #tpu.memory_space<vmem>>, vector<1x2x11xf32>
    %98 = vector.shape_cast %97 : vector<1x2x11xf32> to vector<2x11xf32>
    %99 = tpu.concatenate %98, %74 in 1 : vector<2x11xf32>, vector<2x16xf32> -> vector<2x27xf32>
    %cst_26 = arith.constant dense<0.000000e+00> : vector<2x64xf32>
    %100 = tpu.matmul %99, %0, %cst_26 {dimension_numbers = #tpu.dot_dimension_numbers<[1], [0], [0], [1], [0, 0, 1, 1], [], []>} : vector<2x27xf32>, vector<27x64xf32>, vector<2x64xf32> -> vector<2x64xf32>
    %101 = vector.broadcast %1 : vector<1x64xf32> to vector<2x64xf32>
    %102 = arith.addf %100, %101 : vector<2x64xf32>
    %103 = vector.extract_strided_slice %102 {offsets = [0, 0], sizes = [2, 48], strides = [1, 1]} : vector<2x64xf32> to vector<2x48xf32>
    %104 = arith.negf %103 : vector<2x48xf32>
    %105 = math.exp %104 : vector<2x48xf32>
    %cst_27 = arith.constant 1.000000e+00 : f32
    %106 = vector.broadcast %cst_27 : f32 to vector<2x48xf32>
    %107 = arith.addf %106, %105 : vector<2x48xf32>
    %108 = arith.divf %106, %107 : vector<2x48xf32>
    %109 = vector.extract_strided_slice %102 {offsets = [0, 48], sizes = [2, 16], strides = [1, 1]} : vector<2x64xf32> to vector<2x16xf32>
    %110 = math.tanh %109 : vector<2x16xf32>
    %111 = vector.extract_strided_slice %108 {offsets = [0, 0], sizes = [2, 16], strides = [1, 1]} : vector<2x48xf32> to vector<2x16xf32>
    %112 = vector.extract_strided_slice %108 {offsets = [0, 16], sizes = [2, 16], strides = [1, 1]} : vector<2x48xf32> to vector<2x16xf32>
    %113 = vector.extract_strided_slice %108 {offsets = [0, 32], sizes = [2, 16], strides = [1, 1]} : vector<2x48xf32> to vector<2x16xf32>
    %114 = arith.mulf %112, %72 : vector<2x16xf32>
    %115 = arith.mulf %111, %110 : vector<2x16xf32>
    %116 = arith.addf %114, %115 : vector<2x16xf32>
    %117 = math.tanh %116 : vector<2x16xf32>
    %118 = arith.mulf %113, %117 : vector<2x16xf32>
    %119 = tpu.concatenate %118, %94 in 1 : vector<2x16xf32>, vector<2x16xf32> -> vector<2x32xf32>
    %cst_28 = arith.constant dense<0.000000e+00> : vector<2x64xf32>
    %120 = tpu.matmul %119, %2, %cst_28 {dimension_numbers = #tpu.dot_dimension_numbers<[1], [0], [0], [1], [0, 0, 1, 1], [], []>} : vector<2x32xf32>, vector<32x64xf32>, vector<2x64xf32> -> vector<2x64xf32>
    %121 = vector.broadcast %3 : vector<1x64xf32> to vector<2x64xf32>
    %122 = arith.addf %120, %121 : vector<2x64xf32>
    %123 = vector.extract_strided_slice %122 {offsets = [0, 0], sizes = [2, 48], strides = [1, 1]} : vector<2x64xf32> to vector<2x48xf32>
    %124 = arith.negf %123 : vector<2x48xf32>
    %125 = math.exp %124 : vector<2x48xf32>
    %cst_29 = arith.constant 1.000000e+00 : f32
    %126 = vector.broadcast %cst_29 : f32 to vector<2x48xf32>
    %127 = arith.addf %126, %125 : vector<2x48xf32>
    %128 = arith.divf %126, %127 : vector<2x48xf32>
    %129 = vector.extract_strided_slice %122 {offsets = [0, 48], sizes = [2, 16], strides = [1, 1]} : vector<2x64xf32> to vector<2x16xf32>
    %130 = math.tanh %129 : vector<2x16xf32>
    %131 = vector.extract_strided_slice %128 {offsets = [0, 0], sizes = [2, 16], strides = [1, 1]} : vector<2x48xf32> to vector<2x16xf32>
    %132 = vector.extract_strided_slice %128 {offsets = [0, 16], sizes = [2, 16], strides = [1, 1]} : vector<2x48xf32> to vector<2x16xf32>
    %133 = vector.extract_strided_slice %128 {offsets = [0, 32], sizes = [2, 16], strides = [1, 1]} : vector<2x48xf32> to vector<2x16xf32>
    %134 = arith.mulf %132, %92 : vector<2x16xf32>
    %135 = arith.mulf %131, %130 : vector<2x16xf32>
    %136 = arith.addf %134, %135 : vector<2x16xf32>
    %137 = math.tanh %136 : vector<2x16xf32>
    %138 = arith.mulf %133, %137 : vector<2x16xf32>
    %139 = math.exp %138 : vector<2x16xf32>
    %140 = arith.addf %96, %139 : vector<2x16xf32>
    %c3 = arith.constant 3 : index
    %c0_30 = arith.constant 0 : index
    %c0_31 = arith.constant 0 : index
    %141 = vector.load %arg1[%c3, %c0_30, %c0_31] : memref<8x2x11xf32, #tpu.memory_space<vmem>>, vector<1x2x11xf32>
    %142 = vector.shape_cast %141 : vector<1x2x11xf32> to vector<2x11xf32>
    %143 = tpu.concatenate %142, %118 in 1 : vector<2x11xf32>, vector<2x16xf32> -> vector<2x27xf32>
    %cst_32 = arith.constant dense<0.000000e+00> : vector<2x64xf32>
    %144 = tpu.matmul %143, %0, %cst_32 {dimension_numbers = #tpu.dot_dimension_numbers<[1], [0], [0], [1], [0, 0, 1, 1], [], []>} : vector<2x27xf32>, vector<27x64xf32>, vector<2x64xf32> -> vector<2x64xf32>
    %145 = vector.broadcast %1 : vector<1x64xf32> to vector<2x64xf32>
    %146 = arith.addf %144, %145 : vector<2x64xf32>
    %147 = vector.extract_strided_slice %146 {offsets = [0, 0], sizes = [2, 48], strides = [1, 1]} : vector<2x64xf32> to vector<2x48xf32>
    %148 = arith.negf %147 : vector<2x48xf32>
    %149 = math.exp %148 : vector<2x48xf32>
    %cst_33 = arith.constant 1.000000e+00 : f32
    %150 = vector.broadcast %cst_33 : f32 to vector<2x48xf32>
    %151 = arith.addf %150, %149 : vector<2x48xf32>
    %152 = arith.divf %150, %151 : vector<2x48xf32>
    %153 = vector.extract_strided_slice %146 {offsets = [0, 48], sizes = [2, 16], strides = [1, 1]} : vector<2x64xf32> to vector<2x16xf32>
    %154 = math.tanh %153 : vector<2x16xf32>
    %155 = vector.extract_strided_slice %152 {offsets = [0, 0], sizes = [2, 16], strides = [1, 1]} : vector<2x48xf32> to vector<2x16xf32>
    %156 = vector.extract_strided_slice %152 {offsets = [0, 16], sizes = [2, 16], strides = [1, 1]} : vector<2x48xf32> to vector<2x16xf32>
    %157 = vector.extract_strided_slice %152 {offsets = [0, 32], sizes = [2, 16], strides = [1, 1]} : vector<2x48xf32> to vector<2x16xf32>
    %158 = arith.mulf %156, %116 : vector<2x16xf32>
    %159 = arith.mulf %155, %154 : vector<2x16xf32>
    %160 = arith.addf %158, %159 : vector<2x16xf32>
    %161 = math.tanh %160 : vector<2x16xf32>
    %162 = arith.mulf %157, %161 : vector<2x16xf32>
    %163 = tpu.concatenate %162, %138 in 1 : vector<2x16xf32>, vector<2x16xf32> -> vector<2x32xf32>
    %cst_34 = arith.constant dense<0.000000e+00> : vector<2x64xf32>
    %164 = tpu.matmul %163, %2, %cst_34 {dimension_numbers = #tpu.dot_dimension_numbers<[1], [0], [0], [1], [0, 0, 1, 1], [], []>} : vector<2x32xf32>, vector<32x64xf32>, vector<2x64xf32> -> vector<2x64xf32>
    %165 = vector.broadcast %3 : vector<1x64xf32> to vector<2x64xf32>
    %166 = arith.addf %164, %165 : vector<2x64xf32>
    %167 = vector.extract_strided_slice %166 {offsets = [0, 0], sizes = [2, 48], strides = [1, 1]} : vector<2x64xf32> to vector<2x48xf32>
    %168 = arith.negf %167 : vector<2x48xf32>
    %169 = math.exp %168 : vector<2x48xf32>
    %cst_35 = arith.constant 1.000000e+00 : f32
    %170 = vector.broadcast %cst_35 : f32 to vector<2x48xf32>
    %171 = arith.addf %170, %169 : vector<2x48xf32>
    %172 = arith.divf %170, %171 : vector<2x48xf32>
    %173 = vector.extract_strided_slice %166 {offsets = [0, 48], sizes = [2, 16], strides = [1, 1]} : vector<2x64xf32> to vector<2x16xf32>
    %174 = math.tanh %173 : vector<2x16xf32>
    %175 = vector.extract_strided_slice %172 {offsets = [0, 0], sizes = [2, 16], strides = [1, 1]} : vector<2x48xf32> to vector<2x16xf32>
    %176 = vector.extract_strided_slice %172 {offsets = [0, 16], sizes = [2, 16], strides = [1, 1]} : vector<2x48xf32> to vector<2x16xf32>
    %177 = vector.extract_strided_slice %172 {offsets = [0, 32], sizes = [2, 16], strides = [1, 1]} : vector<2x48xf32> to vector<2x16xf32>
    %178 = arith.mulf %176, %136 : vector<2x16xf32>
    %179 = arith.mulf %175, %174 : vector<2x16xf32>
    %180 = arith.addf %178, %179 : vector<2x16xf32>
    %181 = math.tanh %180 : vector<2x16xf32>
    %182 = arith.mulf %177, %181 : vector<2x16xf32>
    %183 = math.exp %182 : vector<2x16xf32>
    %184 = arith.addf %140, %183 : vector<2x16xf32>
    %c4 = arith.constant 4 : index
    %c0_36 = arith.constant 0 : index
    %c0_37 = arith.constant 0 : index
    %185 = vector.load %arg1[%c4, %c0_36, %c0_37] : memref<8x2x11xf32, #tpu.memory_space<vmem>>, vector<1x2x11xf32>
    %186 = vector.shape_cast %185 : vector<1x2x11xf32> to vector<2x11xf32>
    %187 = tpu.concatenate %186, %162 in 1 : vector<2x11xf32>, vector<2x16xf32> -> vector<2x27xf32>
    %cst_38 = arith.constant dense<0.000000e+00> : vector<2x64xf32>
    %188 = tpu.matmul %187, %0, %cst_38 {dimension_numbers = #tpu.dot_dimension_numbers<[1], [0], [0], [1], [0, 0, 1, 1], [], []>} : vector<2x27xf32>, vector<27x64xf32>, vector<2x64xf32> -> vector<2x64xf32>
    %189 = vector.broadcast %1 : vector<1x64xf32> to vector<2x64xf32>
    %190 = arith.addf %188, %189 : vector<2x64xf32>
    %191 = vector.extract_strided_slice %190 {offsets = [0, 0], sizes = [2, 48], strides = [1, 1]} : vector<2x64xf32> to vector<2x48xf32>
    %192 = arith.negf %191 : vector<2x48xf32>
    %193 = math.exp %192 : vector<2x48xf32>
    %cst_39 = arith.constant 1.000000e+00 : f32
    %194 = vector.broadcast %cst_39 : f32 to vector<2x48xf32>
    %195 = arith.addf %194, %193 : vector<2x48xf32>
    %196 = arith.divf %194, %195 : vector<2x48xf32>
    %197 = vector.extract_strided_slice %190 {offsets = [0, 48], sizes = [2, 16], strides = [1, 1]} : vector<2x64xf32> to vector<2x16xf32>
    %198 = math.tanh %197 : vector<2x16xf32>
    %199 = vector.extract_strided_slice %196 {offsets = [0, 0], sizes = [2, 16], strides = [1, 1]} : vector<2x48xf32> to vector<2x16xf32>
    %200 = vector.extract_strided_slice %196 {offsets = [0, 16], sizes = [2, 16], strides = [1, 1]} : vector<2x48xf32> to vector<2x16xf32>
    %201 = vector.extract_strided_slice %196 {offsets = [0, 32], sizes = [2, 16], strides = [1, 1]} : vector<2x48xf32> to vector<2x16xf32>
    %202 = arith.mulf %200, %160 : vector<2x16xf32>
    %203 = arith.mulf %199, %198 : vector<2x16xf32>
    %204 = arith.addf %202, %203 : vector<2x16xf32>
    %205 = math.tanh %204 : vector<2x16xf32>
    %206 = arith.mulf %201, %205 : vector<2x16xf32>
    %207 = tpu.concatenate %206, %182 in 1 : vector<2x16xf32>, vector<2x16xf32> -> vector<2x32xf32>
    %cst_40 = arith.constant dense<0.000000e+00> : vector<2x64xf32>
    %208 = tpu.matmul %207, %2, %cst_40 {dimension_numbers = #tpu.dot_dimension_numbers<[1], [0], [0], [1], [0, 0, 1, 1], [], []>} : vector<2x32xf32>, vector<32x64xf32>, vector<2x64xf32> -> vector<2x64xf32>
    %209 = vector.broadcast %3 : vector<1x64xf32> to vector<2x64xf32>
    %210 = arith.addf %208, %209 : vector<2x64xf32>
    %211 = vector.extract_strided_slice %210 {offsets = [0, 0], sizes = [2, 48], strides = [1, 1]} : vector<2x64xf32> to vector<2x48xf32>
    %212 = arith.negf %211 : vector<2x48xf32>
    %213 = math.exp %212 : vector<2x48xf32>
    %cst_41 = arith.constant 1.000000e+00 : f32
    %214 = vector.broadcast %cst_41 : f32 to vector<2x48xf32>
    %215 = arith.addf %214, %213 : vector<2x48xf32>
    %216 = arith.divf %214, %215 : vector<2x48xf32>
    %217 = vector.extract_strided_slice %210 {offsets = [0, 48], sizes = [2, 16], strides = [1, 1]} : vector<2x64xf32> to vector<2x16xf32>
    %218 = math.tanh %217 : vector<2x16xf32>
    %219 = vector.extract_strided_slice %216 {offsets = [0, 0], sizes = [2, 16], strides = [1, 1]} : vector<2x48xf32> to vector<2x16xf32>
    %220 = vector.extract_strided_slice %216 {offsets = [0, 16], sizes = [2, 16], strides = [1, 1]} : vector<2x48xf32> to vector<2x16xf32>
    %221 = vector.extract_strided_slice %216 {offsets = [0, 32], sizes = [2, 16], strides = [1, 1]} : vector<2x48xf32> to vector<2x16xf32>
    %222 = arith.mulf %220, %180 : vector<2x16xf32>
    %223 = arith.mulf %219, %218 : vector<2x16xf32>
    %224 = arith.addf %222, %223 : vector<2x16xf32>
    %225 = math.tanh %224 : vector<2x16xf32>
    %226 = arith.mulf %221, %225 : vector<2x16xf32>
    %227 = math.exp %226 : vector<2x16xf32>
    %228 = arith.addf %184, %227 : vector<2x16xf32>
    %c5 = arith.constant 5 : index
    %c0_42 = arith.constant 0 : index
    %c0_43 = arith.constant 0 : index
    %229 = vector.load %arg1[%c5, %c0_42, %c0_43] : memref<8x2x11xf32, #tpu.memory_space<vmem>>, vector<1x2x11xf32>
    %230 = vector.shape_cast %229 : vector<1x2x11xf32> to vector<2x11xf32>
    %231 = tpu.concatenate %230, %206 in 1 : vector<2x11xf32>, vector<2x16xf32> -> vector<2x27xf32>
    %cst_44 = arith.constant dense<0.000000e+00> : vector<2x64xf32>
    %232 = tpu.matmul %231, %0, %cst_44 {dimension_numbers = #tpu.dot_dimension_numbers<[1], [0], [0], [1], [0, 0, 1, 1], [], []>} : vector<2x27xf32>, vector<27x64xf32>, vector<2x64xf32> -> vector<2x64xf32>
    %233 = vector.broadcast %1 : vector<1x64xf32> to vector<2x64xf32>
    %234 = arith.addf %232, %233 : vector<2x64xf32>
    %235 = vector.extract_strided_slice %234 {offsets = [0, 0], sizes = [2, 48], strides = [1, 1]} : vector<2x64xf32> to vector<2x48xf32>
    %236 = arith.negf %235 : vector<2x48xf32>
    %237 = math.exp %236 : vector<2x48xf32>
    %cst_45 = arith.constant 1.000000e+00 : f32
    %238 = vector.broadcast %cst_45 : f32 to vector<2x48xf32>
    %239 = arith.addf %238, %237 : vector<2x48xf32>
    %240 = arith.divf %238, %239 : vector<2x48xf32>
    %241 = vector.extract_strided_slice %234 {offsets = [0, 48], sizes = [2, 16], strides = [1, 1]} : vector<2x64xf32> to vector<2x16xf32>
    %242 = math.tanh %241 : vector<2x16xf32>
    %243 = vector.extract_strided_slice %240 {offsets = [0, 0], sizes = [2, 16], strides = [1, 1]} : vector<2x48xf32> to vector<2x16xf32>
    %244 = vector.extract_strided_slice %240 {offsets = [0, 16], sizes = [2, 16], strides = [1, 1]} : vector<2x48xf32> to vector<2x16xf32>
    %245 = vector.extract_strided_slice %240 {offsets = [0, 32], sizes = [2, 16], strides = [1, 1]} : vector<2x48xf32> to vector<2x16xf32>
    %246 = arith.mulf %244, %204 : vector<2x16xf32>
    %247 = arith.mulf %243, %242 : vector<2x16xf32>
    %248 = arith.addf %246, %247 : vector<2x16xf32>
    %249 = math.tanh %248 : vector<2x16xf32>
    %250 = arith.mulf %245, %249 : vector<2x16xf32>
    %251 = tpu.concatenate %250, %226 in 1 : vector<2x16xf32>, vector<2x16xf32> -> vector<2x32xf32>
    %cst_46 = arith.constant dense<0.000000e+00> : vector<2x64xf32>
    %252 = tpu.matmul %251, %2, %cst_46 {dimension_numbers = #tpu.dot_dimension_numbers<[1], [0], [0], [1], [0, 0, 1, 1], [], []>} : vector<2x32xf32>, vector<32x64xf32>, vector<2x64xf32> -> vector<2x64xf32>
    %253 = vector.broadcast %3 : vector<1x64xf32> to vector<2x64xf32>
    %254 = arith.addf %252, %253 : vector<2x64xf32>
    %255 = vector.extract_strided_slice %254 {offsets = [0, 0], sizes = [2, 48], strides = [1, 1]} : vector<2x64xf32> to vector<2x48xf32>
    %256 = arith.negf %255 : vector<2x48xf32>
    %257 = math.exp %256 : vector<2x48xf32>
    %cst_47 = arith.constant 1.000000e+00 : f32
    %258 = vector.broadcast %cst_47 : f32 to vector<2x48xf32>
    %259 = arith.addf %258, %257 : vector<2x48xf32>
    %260 = arith.divf %258, %259 : vector<2x48xf32>
    %261 = vector.extract_strided_slice %254 {offsets = [0, 48], sizes = [2, 16], strides = [1, 1]} : vector<2x64xf32> to vector<2x16xf32>
    %262 = math.tanh %261 : vector<2x16xf32>
    %263 = vector.extract_strided_slice %260 {offsets = [0, 0], sizes = [2, 16], strides = [1, 1]} : vector<2x48xf32> to vector<2x16xf32>
    %264 = vector.extract_strided_slice %260 {offsets = [0, 16], sizes = [2, 16], strides = [1, 1]} : vector<2x48xf32> to vector<2x16xf32>
    %265 = vector.extract_strided_slice %260 {offsets = [0, 32], sizes = [2, 16], strides = [1, 1]} : vector<2x48xf32> to vector<2x16xf32>
    %266 = arith.mulf %264, %224 : vector<2x16xf32>
    %267 = arith.mulf %263, %262 : vector<2x16xf32>
    %268 = arith.addf %266, %267 : vector<2x16xf32>
    %269 = math.tanh %268 : vector<2x16xf32>
    %270 = arith.mulf %265, %269 : vector<2x16xf32>
    %271 = math.exp %270 : vector<2x16xf32>
    %272 = arith.addf %228, %271 : vector<2x16xf32>
    %c6 = arith.constant 6 : index
    %c0_48 = arith.constant 0 : index
    %c0_49 = arith.constant 0 : index
    %273 = vector.load %arg1[%c6, %c0_48, %c0_49] : memref<8x2x11xf32, #tpu.memory_space<vmem>>, vector<1x2x11xf32>
    %274 = vector.shape_cast %273 : vector<1x2x11xf32> to vector<2x11xf32>
    %275 = tpu.concatenate %274, %250 in 1 : vector<2x11xf32>, vector<2x16xf32> -> vector<2x27xf32>
    %cst_50 = arith.constant dense<0.000000e+00> : vector<2x64xf32>
    %276 = tpu.matmul %275, %0, %cst_50 {dimension_numbers = #tpu.dot_dimension_numbers<[1], [0], [0], [1], [0, 0, 1, 1], [], []>} : vector<2x27xf32>, vector<27x64xf32>, vector<2x64xf32> -> vector<2x64xf32>
    %277 = vector.broadcast %1 : vector<1x64xf32> to vector<2x64xf32>
    %278 = arith.addf %276, %277 : vector<2x64xf32>
    %279 = vector.extract_strided_slice %278 {offsets = [0, 0], sizes = [2, 48], strides = [1, 1]} : vector<2x64xf32> to vector<2x48xf32>
    %280 = arith.negf %279 : vector<2x48xf32>
    %281 = math.exp %280 : vector<2x48xf32>
    %cst_51 = arith.constant 1.000000e+00 : f32
    %282 = vector.broadcast %cst_51 : f32 to vector<2x48xf32>
    %283 = arith.addf %282, %281 : vector<2x48xf32>
    %284 = arith.divf %282, %283 : vector<2x48xf32>
    %285 = vector.extract_strided_slice %278 {offsets = [0, 48], sizes = [2, 16], strides = [1, 1]} : vector<2x64xf32> to vector<2x16xf32>
    %286 = math.tanh %285 : vector<2x16xf32>
    %287 = vector.extract_strided_slice %284 {offsets = [0, 0], sizes = [2, 16], strides = [1, 1]} : vector<2x48xf32> to vector<2x16xf32>
    %288 = vector.extract_strided_slice %284 {offsets = [0, 16], sizes = [2, 16], strides = [1, 1]} : vector<2x48xf32> to vector<2x16xf32>
    %289 = vector.extract_strided_slice %284 {offsets = [0, 32], sizes = [2, 16], strides = [1, 1]} : vector<2x48xf32> to vector<2x16xf32>
    %290 = arith.mulf %288, %248 : vector<2x16xf32>
    %291 = arith.mulf %287, %286 : vector<2x16xf32>
    %292 = arith.addf %290, %291 : vector<2x16xf32>
    %293 = math.tanh %292 : vector<2x16xf32>
    %294 = arith.mulf %289, %293 : vector<2x16xf32>
    %295 = tpu.concatenate %294, %270 in 1 : vector<2x16xf32>, vector<2x16xf32> -> vector<2x32xf32>
    %cst_52 = arith.constant dense<0.000000e+00> : vector<2x64xf32>
    %296 = tpu.matmul %295, %2, %cst_52 {dimension_numbers = #tpu.dot_dimension_numbers<[1], [0], [0], [1], [0, 0, 1, 1], [], []>} : vector<2x32xf32>, vector<32x64xf32>, vector<2x64xf32> -> vector<2x64xf32>
    %297 = vector.broadcast %3 : vector<1x64xf32> to vector<2x64xf32>
    %298 = arith.addf %296, %297 : vector<2x64xf32>
    %299 = vector.extract_strided_slice %298 {offsets = [0, 0], sizes = [2, 48], strides = [1, 1]} : vector<2x64xf32> to vector<2x48xf32>
    %300 = arith.negf %299 : vector<2x48xf32>
    %301 = math.exp %300 : vector<2x48xf32>
    %cst_53 = arith.constant 1.000000e+00 : f32
    %302 = vector.broadcast %cst_53 : f32 to vector<2x48xf32>
    %303 = arith.addf %302, %301 : vector<2x48xf32>
    %304 = arith.divf %302, %303 : vector<2x48xf32>
    %305 = vector.extract_strided_slice %298 {offsets = [0, 48], sizes = [2, 16], strides = [1, 1]} : vector<2x64xf32> to vector<2x16xf32>
    %306 = math.tanh %305 : vector<2x16xf32>
    %307 = vector.extract_strided_slice %304 {offsets = [0, 0], sizes = [2, 16], strides = [1, 1]} : vector<2x48xf32> to vector<2x16xf32>
    %308 = vector.extract_strided_slice %304 {offsets = [0, 16], sizes = [2, 16], strides = [1, 1]} : vector<2x48xf32> to vector<2x16xf32>
    %309 = vector.extract_strided_slice %304 {offsets = [0, 32], sizes = [2, 16], strides = [1, 1]} : vector<2x48xf32> to vector<2x16xf32>
    %310 = arith.mulf %308, %268 : vector<2x16xf32>
    %311 = arith.mulf %307, %306 : vector<2x16xf32>
    %312 = arith.addf %310, %311 : vector<2x16xf32>
    %313 = math.tanh %312 : vector<2x16xf32>
    %314 = arith.mulf %309, %313 : vector<2x16xf32>
    %315 = math.exp %314 : vector<2x16xf32>
    %316 = arith.addf %272, %315 : vector<2x16xf32>
    %c7 = arith.constant 7 : index
    %c0_54 = arith.constant 0 : index
    %c0_55 = arith.constant 0 : index
    %317 = vector.load %arg1[%c7, %c0_54, %c0_55] : memref<8x2x11xf32, #tpu.memory_space<vmem>>, vector<1x2x11xf32>
    %318 = vector.shape_cast %317 : vector<1x2x11xf32> to vector<2x11xf32>
    %319 = tpu.concatenate %318, %294 in 1 : vector<2x11xf32>, vector<2x16xf32> -> vector<2x27xf32>
    %cst_56 = arith.constant dense<0.000000e+00> : vector<2x64xf32>
    %320 = tpu.matmul %319, %0, %cst_56 {dimension_numbers = #tpu.dot_dimension_numbers<[1], [0], [0], [1], [0, 0, 1, 1], [], []>} : vector<2x27xf32>, vector<27x64xf32>, vector<2x64xf32> -> vector<2x64xf32>
    %321 = vector.broadcast %1 : vector<1x64xf32> to vector<2x64xf32>
    %322 = arith.addf %320, %321 : vector<2x64xf32>
    %323 = vector.extract_strided_slice %322 {offsets = [0, 0], sizes = [2, 48], strides = [1, 1]} : vector<2x64xf32> to vector<2x48xf32>
    %324 = arith.negf %323 : vector<2x48xf32>
    %325 = math.exp %324 : vector<2x48xf32>
    %cst_57 = arith.constant 1.000000e+00 : f32
    %326 = vector.broadcast %cst_57 : f32 to vector<2x48xf32>
    %327 = arith.addf %326, %325 : vector<2x48xf32>
    %328 = arith.divf %326, %327 : vector<2x48xf32>
    %329 = vector.extract_strided_slice %322 {offsets = [0, 48], sizes = [2, 16], strides = [1, 1]} : vector<2x64xf32> to vector<2x16xf32>
    %330 = math.tanh %329 : vector<2x16xf32>
    %331 = vector.extract_strided_slice %328 {offsets = [0, 0], sizes = [2, 16], strides = [1, 1]} : vector<2x48xf32> to vector<2x16xf32>
    %332 = vector.extract_strided_slice %328 {offsets = [0, 16], sizes = [2, 16], strides = [1, 1]} : vector<2x48xf32> to vector<2x16xf32>
    %333 = vector.extract_strided_slice %328 {offsets = [0, 32], sizes = [2, 16], strides = [1, 1]} : vector<2x48xf32> to vector<2x16xf32>
    %334 = arith.mulf %332, %292 : vector<2x16xf32>
    %335 = arith.mulf %331, %330 : vector<2x16xf32>
    %336 = arith.addf %334, %335 : vector<2x16xf32>
    %337 = math.tanh %336 : vector<2x16xf32>
    %338 = arith.mulf %333, %337 : vector<2x16xf32>
    %339 = tpu.concatenate %338, %314 in 1 : vector<2x16xf32>, vector<2x16xf32> -> vector<2x32xf32>
    %cst_58 = arith.constant dense<0.000000e+00> : vector<2x64xf32>
    %340 = tpu.matmul %339, %2, %cst_58 {dimension_numbers = #tpu.dot_dimension_numbers<[1], [0], [0], [1], [0, 0, 1, 1], [], []>} : vector<2x32xf32>, vector<32x64xf32>, vector<2x64xf32> -> vector<2x64xf32>
    %341 = vector.broadcast %3 : vector<1x64xf32> to vector<2x64xf32>
    %342 = arith.addf %340, %341 : vector<2x64xf32>
    %343 = vector.extract_strided_slice %342 {offsets = [0, 0], sizes = [2, 48], strides = [1, 1]} : vector<2x64xf32> to vector<2x48xf32>
    %344 = arith.negf %343 : vector<2x48xf32>
    %345 = math.exp %344 : vector<2x48xf32>
    %cst_59 = arith.constant 1.000000e+00 : f32
    %346 = vector.broadcast %cst_59 : f32 to vector<2x48xf32>
    %347 = arith.addf %346, %345 : vector<2x48xf32>
    %348 = arith.divf %346, %347 : vector<2x48xf32>
    %349 = vector.extract_strided_slice %342 {offsets = [0, 48], sizes = [2, 16], strides = [1, 1]} : vector<2x64xf32> to vector<2x16xf32>
    %350 = math.tanh %349 : vector<2x16xf32>
    %351 = vector.extract_strided_slice %348 {offsets = [0, 0], sizes = [2, 16], strides = [1, 1]} : vector<2x48xf32> to vector<2x16xf32>
    %352 = vector.extract_strided_slice %348 {offsets = [0, 16], sizes = [2, 16], strides = [1, 1]} : vector<2x48xf32> to vector<2x16xf32>
    %353 = vector.extract_strided_slice %348 {offsets = [0, 32], sizes = [2, 16], strides = [1, 1]} : vector<2x48xf32> to vector<2x16xf32>
    %354 = arith.mulf %352, %312 : vector<2x16xf32>
    %355 = arith.mulf %351, %350 : vector<2x16xf32>
    %356 = arith.addf %354, %355 : vector<2x16xf32>
    %357 = math.tanh %356 : vector<2x16xf32>
    %358 = arith.mulf %353, %357 : vector<2x16xf32>
    %359 = math.exp %358 : vector<2x16xf32>
    %360 = arith.addf %316, %359 : vector<2x16xf32>
    %361 = math.exp %358 : vector<2x16xf32>
    %362 = arith.divf %361, %360 : vector<2x16xf32>
    %c0_60 = arith.constant 0 : index
    %c0_61 = arith.constant 0 : index
    %363 = vector.load %arg6[%c0_60, %c0_61] : memref<16x3xf32, #tpu.memory_space<vmem>>, vector<16x3xf32>
    %cst_62 = arith.constant dense<0.000000e+00> : vector<2x3xf32>
    %364 = tpu.matmul %362, %363, %cst_62 {dimension_numbers = #tpu.dot_dimension_numbers<[1], [0], [0], [1], [0, 0, 1, 1], [], []>} : vector<2x16xf32>, vector<16x3xf32>, vector<2x3xf32> -> vector<2x3xf32>
    %c0_63 = arith.constant 0 : index
    %c0_64 = arith.constant 0 : index
    %365 = vector.load %arg7[%c0_63, %c0_64] : memref<1x3xf32, #tpu.memory_space<vmem>>, vector<1x3xf32>
    %366 = vector.broadcast %365 : vector<1x3xf32> to vector<2x3xf32>
    %367 = arith.addf %364, %366 : vector<2x3xf32>
    %cst_65 = arith.constant dense<0xFF800000> : vector<2xf32>
    %368 = vector.multi_reduction <maximumf>, %367, %cst_65 [1] : vector<2x3xf32> to vector<2xf32>
    %369 = vector.shape_cast %368 : vector<2xf32> to vector<2x1xf32>
    %370 = vector.broadcast %369 : vector<2x1xf32> to vector<2x3xf32>
    %371 = arith.subf %367, %370 : vector<2x3xf32>
    %372 = math.exp %371 : vector<2x3xf32>
    %cst_66 = arith.constant dense<0.000000e+00> : vector<2xf32>
    %373 = vector.multi_reduction <add>, %372, %cst_66 [1] : vector<2x3xf32> to vector<2xf32>
    %374 = vector.shape_cast %373 : vector<2xf32> to vector<2x1xf32>
    %375 = vector.broadcast %374 : vector<2x1xf32> to vector<2x3xf32>
    %376 = arith.divf %372, %375 : vector<2x3xf32>
    %c0_67 = arith.constant 0 : index
    %c0_68 = arith.constant 0 : index
    %377 = vector.load %arg8[%c0_67, %c0_68] : memref<2x3xf32, #tpu.memory_space<vmem>>, vector<2x3xf32>
    tpu.vector_store %arg8[%c0_67, %c0_68], %376 {strides = array<i32>} : memref<2x3xf32, #tpu.memory_space<vmem>>, vector<2x3xf32>,
    return
  }
  func.func @transform_0(%arg0: i32) -> (i32, i32, i32) {
    %c0_i32 = arith.constant 0 : i32
    %c0_i32_0 = arith.constant 0 : i32
    %c0_i32_1 = arith.constant 0 : i32
    %c0_i32_2 = arith.constant 0 : i32
    return %c0_i32, %c0_i32_0, %c0_i32_1 : i32, i32, i32
  }
  func.func @transform_1(%arg0: i32) -> (i32, i32) {
    %c0_i32 = arith.constant 0 : i32
    %c0_i32_0 = arith.constant 0 : i32
    %c0_i32_1 = arith.constant 0 : i32
    return %c0_i32, %c0_i32_0 : i32, i32
  }
  func.func @transform_2(%arg0: i32) -> (i32, i32) {
    %c0_i32 = arith.constant 0 : i32
    %c0_i32_0 = arith.constant 0 : i32
    %c0_i32_1 = arith.constant 0 : i32
    return %c0_i32, %c0_i32_0 : i32, i32
  }
  func.func @transform_3(%arg0: i32) -> (i32, i32) {
    %c0_i32 = arith.constant 0 : i32
    %c0_i32_0 = arith.constant 0 : i32
    %c0_i32_1 = arith.constant 0 : i32
    return %c0_i32, %c0_i32_0 : i32, i32
  }
  func.func @transform_4(%arg0: i32) -> (i32, i32) {
    %c0_i32 = arith.constant 0 : i32
    %c0_i32_0 = arith.constant 0 : i32
    %c0_i32_1 = arith.constant 0 : i32
    return %c0_i32, %c0_i32_0 : i32, i32
  }
  func.func @transform_5(%arg0: i32) -> (i32, i32) {
    %c0_i32 = arith.constant 0 : i32
    %c0_i32_0 = arith.constant 0 : i32
    %c0_i32_1 = arith.constant 0 : i32
    return %c0_i32, %c0_i32_0 : i32, i32
  }
  func.func @transform_6(%arg0: i32) -> (i32, i32) {
    %c0_i32 = arith.constant 0 : i32
    %c0_i32_0 = arith.constant 0 : i32
    %c0_i32_1 = arith.constant 0 : i32
    return %c0_i32, %c0_i32_0 : i32, i32
  }
  func.func @transform_7(%arg0: i32) -> (i32, i32) {
    %c0_i32 = arith.constant 0 : i32
    %c0_i32_0 = arith.constant 0 : i32
    %c0_i32_1 = arith.constant 0 : i32
    return %c0_i32, %c0_i32_0 : i32, i32
  }
}

</mosaic_0001>

<llo_original>
// kernel: rnn_forward.1
$region0: #{rnn_forward.1}
  #allocation0 [shape = 'u32[]', space=smem, size = 0x4, offset = 0x4, fixed_abs, tag = 'smem constant byte address 0x4 - core index']
  #allocation1 [shape = 'u32[72,128]{1,0:T(1,128)}', space=vmem, size = 0x9000, scoped, tag = 'internal scratch']
  %s0 = inlined_call_operand.vmem [shape: f32[8,2,11], index: 0, kind: input, shape index: {}]
  %s1 = inlined_call_operand.vmem [shape: f32[27,64], index: 1, kind: input, shape index: {}]
  %s2 = inlined_call_operand.vmem [shape: f32[1,64], index: 2, kind: input, shape index: {}]
  %s3 = inlined_call_operand.vmem [shape: f32[32,64], index: 3, kind: input, shape index: {}]
  %s4 = inlined_call_operand.vmem [shape: f32[1,64], index: 4, kind: input, shape index: {}]
  %s5 = inlined_call_operand.vmem [shape: f32[16,3], index: 5, kind: input, shape index: {}]
  %s6 = inlined_call_operand.vmem [shape: f32[1,3], index: 6, kind: input, shape index: {}]
  %s7 = inlined_call_operand.hbm [shape: f32[2,3], index: 7, kind: output, shape index: {}]
  %s8 = sld [smem:[#allocation0]]
  $region38: #{rnn_forward.1} parent=0
    _
  %s10 = ssub.s32 1, %s8
  %s11 = scalar_select 0, %s10, %s8
  $region1: #{rnn_forward.1} parent=0
    #allocation2 [shape = 'u8[1024]{0}', space=vmem, size = 0x400, scoped, tag = 'output window, operand 0, single buffered']
    #allocation3 [shape = 's32[1]{0}', space=sflag, size = 0x4, scoped, tag = 'scoped memory for rnn_forward.1']
    %12 = vsyncpa [#allocation3], 0
    // Predicated region
    $region2: #{rnn_forward.1} parent=1 // pred_check
      _
    $region3: #{rnn_forward.1} parent=1 // pred_check_branch
      %14 = sbr.rel (0) target = $region5
    $region4: #{rnn_forward.1} parent=1 // pred_region
      _
    $region5: #{rnn_forward.1} parent=1 // pred_fallthru
      _
    // Predicated region
    $region6: #{rnn_forward.1} parent=1 // pred_check
      _
    $region7: #{rnn_forward.1} parent=1 // pred_check_branch
      %16 = sbr.rel (0) target = $region9
    $region8: #{rnn_forward.1} parent=1 // pred_region
      _
    $region9: #{rnn_forward.1} parent=1 // pred_fallthru
      _
    // Predicated region
    $region10: #{rnn_forward.1} parent=1 // pred_check
      _
    $region11: #{rnn_forward.1} parent=1 // pred_check_branch
      %18 = sbr.rel (0) target = $region13
    $region12: #{rnn_forward.1} parent=1 // pred_region
      _
    $region13: #{rnn_forward.1} parent=1 // pred_fallthru
      _
    // Predicated region
    $region14: #{rnn_forward.1} parent=1 // pred_check
      _
    $region15: #{rnn_forward.1} parent=1 // pred_check_branch
      %20 = sbr.rel (0) target = $region17
    $region16: #{rnn_forward.1} parent=1 // pred_region
      _
    $region17: #{rnn_forward.1} parent=1 // pred_fallthru
      _
    // Predicated region
    $region18: #{rnn_forward.1} parent=1 // pred_check
      _
    $region19: #{rnn_forward.1} parent=1 // pred_check_branch
      %22 = sbr.rel (0) target = $region21
    $region20: #{rnn_forward.1} parent=1 // pred_region
      _
    $region21: #{rnn_forward.1} parent=1 // pred_fallthru
      _
    // Predicated region
    $region22: #{rnn_forward.1} parent=1 // pred_check
      _
    $region23: #{rnn_forward.1} parent=1 // pred_check_branch
      %24 = sbr.rel (0) target = $region25
    $region24: #{rnn_forward.1} parent=1 // pred_region
      _
    $region25: #{rnn_forward.1} parent=1 // pred_fallthru
      _
    // Predicated region
    $region26: #{rnn_forward.1} parent=1 // pred_check
      _
    $region27: #{rnn_forward.1} parent=1 // pred_check_branch
      %26 = sbr.rel (0) target = $region29
    $region28: #{rnn_forward.1} parent=1 // pred_region
      _
    $region29: #{rnn_forward.1} parent=1 // pred_fallthru
      _
    %v27 = vld [vmem:[%s1] sm:$0xff]
    %v28 = vld [vmem:[%s1 + $0x8] sm:$0xff]
    %v29 = vld [vmem:[%s1 + $0x10] sm:$0xff]
    %v30 = vld [vmem:[%s1 + $0x18] sm:$0x7]
    %v31 = vld [vmem:[%s2] sm:$0x1]
    %v32 = vld [vmem:[%s3] sm:$0xff]
    %v33 = vld [vmem:[%s3 + $0x8] sm:$0xff]
    %v34 = vld [vmem:[%s3 + $0x10] sm:$0xff]
    %v35 = vld [vmem:[%s3 + $0x18] sm:$0xff]
    %v36 = vld [vmem:[%s4] sm:$0x1]
    %v37 = vld [vmem:[%s0] sm:$0x3]
    %vm38 = vcmask 89088
    %v39 = vsel %vm38, %v37, 0.0
    %v41 = vperm.slane %v31, 0
    %vm43 = vcmask 220160
    %v45 = vsel %vm43, %v39, 0
    %vm47 = vcmask 1042432
    %v49 = vsel %vm47, %v30, 0
    %51 = vmatpush.msra.mxu0 0.0
    %52 = vmatpush.msra.mxu0 0.0
    %53 = vmatpush.msra.mxu0 0.0
    %54 = vmatpush.msra.mxu0 0.0
    %55 = vmatpush.msra.mxu0 0.0
    %56 = vmatpush.msra.mxu0 0.0
    %57 = vmatpush.msra.mxu0 0.0
    %58 = vmatpush.msra.mxu0 0.0
    %59 = vmatpush.msra.mxu0 0.0
    %60 = vmatpush.msra.mxu0 0.0
    %61 = vmatpush.msra.mxu0 0.0
    %62 = vmatpush.msra.mxu0 0.0
    %63 = vmatpush.msra.mxu0 %v49
    %64 = vmatpush.msra.mxu0 %v29
    %65 = vmatpush.msra.mxu0 %v28
    %66 = vmatpush.msra.mxu0 %v27
    %67 = vmatmul.f32.gmra.mxu0 %v45
    %v68 = vpop.f32.mrf.mxu0
    %v69 = vadd.f32 %v41, %v68
    %70 = vdwg.mxu0
    %v71 = vxor.u32 %v69, 2147483648
    %v72 = vmul.f32 %v71, 1.442695
    %v73 = vpow.pop %v72
    %v74 = vadd.f32 %v73, 1.0
    %v75 = vrcp.pop %v74
    %v76 = vmul.f32 %v74, %v75
    %v77 = vsub.f32 1.0, %v76
    %v78 = vmul.f32 %v75, %v77
    %v79 = vadd.f32 %v75, %v78
    %vm80 = vweird.f32 %v74
    %vm81 = vweird.f32 %v75
    %vm82 = vmor %vm80, %vm81
    %v83 = vsel %vm82, %v75, %v79
    %v84 = vand.u32 2147483647, %v74
    %vm85 = vcmp.eq.f32.partialorder %v84, 8.507059e+37
    %v86 = vand.u32 %v74, 2147483648
    %v87 = vor.u32 1.1754944e-38, %v86
    %v88 = vsel %vm85, %v87, %v83
    %v89 = vmul.f32 1.0, %v88
    %v90 = vtanh.pop %v69
    %v91 = vmul.f32 %v89, 0.0
    %93 = vrot.lane.b32.xlu0 %v90, 80
    %v94 = vpop.permute.xlu0 %93
    %v96 = vmul.f32 %v89, %v94
    %98 = vrot.lane.b32.xlu0 %v96, 16
    %v99 = vpop.permute.xlu0 %98
    %v101 = vadd.f32 %v91, %v99
    %v102 = vtanh.pop %v101
    %104 = vrot.lane.b32.xlu0 %v102, 16
    %v105 = vpop.permute.xlu0 %104
    %v107 = vmul.f32 %v89, %v105
    %109 = vrot.lane.b32.xlu0 %v107, 96
    %v110 = vpop.permute.xlu0 %109
    %vm112 = vcmask 130048
    %v113 = vsel %vm112, %v110, 0.0
    %v115 = vperm.slane %v36, 0
    %vm117 = vcmask 261120
    %v119 = vsel %vm117, %v113, 0
    %121 = vmatpush.msra.mxu0 0.0
    %122 = vmatpush.msra.mxu0 0.0
    %123 = vmatpush.msra.mxu0 0.0
    %124 = vmatpush.msra.mxu0 0.0
    %125 = vmatpush.msra.mxu0 0.0
    %126 = vmatpush.msra.mxu0 0.0
    %127 = vmatpush.msra.mxu0 0.0
    %128 = vmatpush.msra.mxu0 0.0
    %129 = vmatpush.msra.mxu0 0.0
    %130 = vmatpush.msra.mxu0 0.0
    %131 = vmatpush.msra.mxu0 0.0
    %132 = vmatpush.msra.mxu0 0.0
    %133 = vmatpush.msra.mxu0 %v35
    %134 = vmatpush.msra.mxu0 %v34
    %135 = vmatpush.msra.mxu0 %v33
    %136 = vmatpush.msra.mxu0 %v32
    %137 = vmatmul.f32.gmra.mxu0 %v119
    %v138 = vpop.f32.mrf.mxu0
    %v139 = vadd.f32 %v115, %v138
    %140 = vdwg.mxu0
    %v141 = vxor.u32 %v139, 2147483648
    %v142 = vmul.f32 %v141, 1.442695
    %v143 = vpow.pop %v142
    %v144 = vadd.f32 %v143, 1.0
    %v145 = vrcp.pop %v144
    %v146 = vmul.f32 %v144, %v145
    %v147 = vsub.f32 1.0, %v146
    %v148 = vmul.f32 %v145, %v147
    %v149 = vadd.f32 %v145, %v148
    %vm150 = vweird.f32 %v144
    %vm151 = vweird.f32 %v145
    %vm152 = vmor %vm150, %vm151
    %v153 = vsel %vm152, %v145, %v149
    %v154 = vand.u32 2147483647, %v144
    %vm155 = vcmp.eq.f32.partialorder %v154, 8.507059e+37
    %v156 = vand.u32 %v144, 2147483648
    %v157 = vor.u32 1.1754944e-38, %v156
    %v158 = vsel %vm155, %v157, %v153
    %v159 = vmul.f32 1.0, %v158
    %v160 = vtanh.pop %v139
    %v161 = vmul.f32 %v159, 0.0
    %163 = vrot.lane.b32.xlu0 %v160, 80
    %v164 = vpop.permute.xlu0 %163
    %v166 = vmul.f32 %v159, %v164
    %168 = vrot.lane.b32.xlu0 %v166, 16
    %v169 = vpop.permute.xlu0 %168
    %v171 = vadd.f32 %v161, %v169
    %v172 = vtanh.pop %v171
    %174 = vrot.lane.b32.xlu0 %v172, 16
    %v175 = vpop.permute.xlu0 %174
    %v177 = vmul.f32 %v159, %v175
    %v178 = vmul.f32 %v177, 1.442695
    %v179 = vpow.pop %v178
    %v180 = vadd.f32 %v179, 0.0
    %s181 = scalar_lea.vmem %s0, 2
    %v182 = vld [vmem:[%s181] sm:$0x3]
    %183 = vrot.lane.b32.xlu0 %v107, 107
    %v184 = vpop.permute.xlu0 %183
    %v186 = vsel %vm38, %v182, %v184
    %v188 = vsel %vm43, %v186, 0
    %190 = vmatpush.msra.mxu0 0.0
    %191 = vmatpush.msra.mxu0 0.0
    %192 = vmatpush.msra.mxu0 0.0
    %193 = vmatpush.msra.mxu0 0.0
    %194 = vmatpush.msra.mxu0 0.0
    %195 = vmatpush.msra.mxu0 0.0
    %196 = vmatpush.msra.mxu0 0.0
    %197 = vmatpush.msra.mxu0 0.0
    %198 = vmatpush.msra.mxu0 0.0
    %199 = vmatpush.msra.mxu0 0.0
    %200 = vmatpush.msra.mxu0 0.0
    %201 = vmatpush.msra.mxu0 0.0
    %202 = vmatpush.msra.mxu0 %v49
    %203 = vmatpush.msra.mxu0 %v29
    %204 = vmatpush.msra.mxu0 %v28
    %205 = vmatpush.msra.mxu0 %v27
    %206 = vmatmul.f32.gmra.mxu0 %v188
    %v207 = vpop.f32.mrf.mxu0
    %v208 = vadd.f32 %v41, %v207
    %209 = vdwg.mxu0
    %v210 = vxor.u32 %v208, 2147483648
    %v211 = vmul.f32 %v210, 1.442695
    %v212 = vpow.pop %v211
    %v213 = vadd.f32 %v212, 1.0
    %v214 = vrcp.pop %v213
    %v215 = vmul.f32 %v213, %v214
    %v216 = vsub.f32 1.0, %v215
    %v217 = vmul.f32 %v214, %v216
    %v218 = vadd.f32 %v214, %v217
    %vm219 = vweird.f32 %v213
    %vm220 = vweird.f32 %v214
    %vm221 = vmor %vm219, %vm220
    %v222 = vsel %vm221, %v214, %v218
    %v223 = vand.u32 2147483647, %v213
    %vm224 = vcmp.eq.f32.partialorder %v223, 8.507059e+37
    %v225 = vand.u32 %v213, 2147483648
    %v226 = vor.u32 1.1754944e-38, %v225
    %v227 = vsel %vm224, %v226, %v222
    %v228 = vmul.f32 1.0, %v227
    %v229 = vtanh.pop %v208
    %v230 = vmul.f32 %v228, %v101
    %232 = vrot.lane.b32.xlu0 %v229, 80
    %v233 = vpop.permute.xlu0 %232
    %v235 = vmul.f32 %v228, %v233
    %237 = vrot.lane.b32.xlu0 %v235, 16
    %v238 = vpop.permute.xlu0 %237
    %v240 = vadd.f32 %v230, %v238
    %v241 = vtanh.pop %v240
    %243 = vrot.lane.b32.xlu0 %v241, 16
    %v244 = vpop.permute.xlu0 %243
    %v246 = vmul.f32 %v228, %v244
    %248 = vrot.lane.b32.xlu0 %v246, 96
    %v249 = vpop.permute.xlu0 %248
    %252 = vrot.lane.b32.xlu0 %v177, 112
    %v253 = vpop.permute.xlu0 %252
    %v255 = vsel %vm112, %v249, %v253
    %v257 = vsel %vm117, %v255, 0
    %259 = vmatpush.msra.mxu0 0.0
    %260 = vmatpush.msra.mxu0 0.0
    %261 = vmatpush.msra.mxu0 0.0
    %262 = vmatpush.msra.mxu0 0.0
    %263 = vmatpush.msra.mxu0 0.0
    %264 = vmatpush.msra.mxu0 0.0
    %265 = vmatpush.msra.mxu0 0.0
    %266 = vmatpush.msra.mxu0 0.0
    %267 = vmatpush.msra.mxu0 0.0
    %268 = vmatpush.msra.mxu0 0.0
    %269 = vmatpush.msra.mxu0 0.0
    %270 = vmatpush.msra.mxu0 0.0
    %271 = vmatpush.msra.mxu0 %v35
    %272 = vmatpush.msra.mxu0 %v34
    %273 = vmatpush.msra.mxu0 %v33
    %274 = vmatpush.msra.mxu0 %v32
    %275 = vmatmul.f32.gmra.mxu0 %v257
    %v276 = vpop.f32.mrf.mxu0
    %v277 = vadd.f32 %v115, %v276
    %278 = vdwg.mxu0
    %v279 = vxor.u32 %v277, 2147483648
    %v280 = vmul.f32 %v279, 1.442695
    %v281 = vpow.pop %v280
    %v282 = vadd.f32 %v281, 1.0
    %v283 = vrcp.pop %v282
    %v284 = vmul.f32 %v282, %v283
    %v285 = vsub.f32 1.0, %v284
    %v286 = vmul.f32 %v283, %v285
    %v287 = vadd.f32 %v283, %v286
    %vm288 = vweird.f32 %v282
    %vm289 = vweird.f32 %v283
    %vm290 = vmor %vm288, %vm289
    %v291 = vsel %vm290, %v283, %v287
    %v292 = vand.u32 2147483647, %v282
    %vm293 = vcmp.eq.f32.partialorder %v292, 8.507059e+37
    %v294 = vand.u32 %v282, 2147483648
    %v295 = vor.u32 1.1754944e-38, %v294
    %v296 = vsel %vm293, %v295, %v291
    %v297 = vmul.f32 1.0, %v296
    %v298 = vtanh.pop %v277
    %v299 = vmul.f32 %v297, %v171
    %301 = vrot.lane.b32.xlu0 %v298, 80
    %v302 = vpop.permute.xlu0 %301
    %v304 = vmul.f32 %v297, %v302
    %306 = vrot.lane.b32.xlu0 %v304, 16
    %v307 = vpop.permute.xlu0 %306
    %v309 = vadd.f32 %v299, %v307
    %v310 = vtanh.pop %v309
    %312 = vrot.lane.b32.xlu0 %v310, 16
    %v313 = vpop.permute.xlu0 %312
    %v315 = vmul.f32 %v297, %v313
    %v316 = vmul.f32 %v315, 1.442695
    %v317 = vpow.pop %v316
    %v318 = vadd.f32 %v180, %v317
    %s319 = scalar_lea.vmem %s0, 4
    %v320 = vld [vmem:[%s319] sm:$0x3]
    %321 = vrot.lane.b32.xlu0 %v246, 107
    %v322 = vpop.permute.xlu0 %321
    %v324 = vsel %vm38, %v320, %v322
    %v326 = vsel %vm43, %v324, 0
    %328 = vmatpush.msra.mxu0 0.0
    %329 = vmatpush.msra.mxu0 0.0
    %330 = vmatpush.msra.mxu0 0.0
    %331 = vmatpush.msra.mxu0 0.0
    %332 = vmatpush.msra.mxu0 0.0
    %333 = vmatpush.msra.mxu0 0.0
    %334 = vmatpush.msra.mxu0 0.0
    %335 = vmatpush.msra.mxu0 0.0
    %336 = vmatpush.msra.mxu0 0.0
    %337 = vmatpush.msra.mxu0 0.0
    %338 = vmatpush.msra.mxu0 0.0
    %339 = vmatpush.msra.mxu0 0.0
    %340 = vmatpush.msra.mxu0 %v49
    %341 = vmatpush.msra.mxu0 %v29
    %342 = vmatpush.msra.mxu0 %v28
    %343 = vmatpush.msra.mxu0 %v27
    %344 = vmatmul.f32.gmra.mxu0 %v326
    %v345 = vpop.f32.mrf.mxu0
    %v346 = vadd.f32 %v41, %v345
    %347 = vdwg.mxu0
    %v348 = vxor.u32 %v346, 2147483648
    %v349 = vmul.f32 %v348, 1.442695
    %v350 = vpow.pop %v349
    %v351 = vadd.f32 %v350, 1.0
    %v352 = vrcp.pop %v351
    %v353 = vmul.f32 %v351, %v352
    %v354 = vsub.f32 1.0, %v353
    %v355 = vmul.f32 %v352, %v354
    %v356 = vadd.f32 %v352, %v355
    %vm357 = vweird.f32 %v351
    %vm358 = vweird.f32 %v352
    %vm359 = vmor %vm357, %vm358
    %v360 = vsel %vm359, %v352, %v356
    %v361 = vand.u32 2147483647, %v351
    %vm362 = vcmp.eq.f32.partialorder %v361, 8.507059e+37
    %v363 = vand.u32 %v351, 2147483648
    %v364 = vor.u32 1.1754944e-38, %v363
    %v365 = vsel %vm362, %v364, %v360
    %v366 = vmul.f32 1.0, %v365
    %v367 = vtanh.pop %v346
    %v368 = vmul.f32 %v366, %v240
    %370 = vrot.lane.b32.xlu0 %v367, 80
    %v371 = vpop.permute.xlu0 %370
    %v373 = vmul.f32 %v366, %v371
    %375 = vrot.lane.b32.xlu0 %v373, 16
    %v376 = vpop.permute.xlu0 %375
    %v378 = vadd.f32 %v368, %v376
    %v379 = vtanh.pop %v378
    %381 = vrot.lane.b32.xlu0 %v379, 16
    %v382 = vpop.permute.xlu0 %381
    %v384 = vmul.f32 %v366, %v382
    %386 = vrot.lane.b32.xlu0 %v384, 96
    %v387 = vpop.permute.xlu0 %386
    %390 = vrot.lane.b32.xlu0 %v315, 112
    %v391 = vpop.permute.xlu0 %390
    %v393 = vsel %vm112, %v387, %v391
    %v395 = vsel %vm117, %v393, 0
    %397 = vmatpush.msra.mxu0 0.0
    %398 = vmatpush.msra.mxu0 0.0
    %399 = vmatpush.msra.mxu0 0.0
    %400 = vmatpush.msra.mxu0 0.0
    %401 = vmatpush.msra.mxu0 0.0
    %402 = vmatpush.msra.mxu0 0.0
    %403 = vmatpush.msra.mxu0 0.0
    %404 = vmatpush.msra.mxu0 0.0
    %405 = vmatpush.msra.mxu0 0.0
    %406 = vmatpush.msra.mxu0 0.0
    %407 = vmatpush.msra.mxu0 0.0
    %408 = vmatpush.msra.mxu0 0.0
    %409 = vmatpush.msra.mxu0 %v35
    %410 = vmatpush.msra.mxu0 %v34
    %411 = vmatpush.msra.mxu0 %v33
    %412 = vmatpush.msra.mxu0 %v32
    %413 = vmatmul.f32.gmra.mxu0 %v395
    %v414 = vpop.f32.mrf.mxu0
    %v415 = vadd.f32 %v115, %v414
    %416 = vdwg.mxu0
    %v417 = vxor.u32 %v415, 2147483648
    %v418 = vmul.f32 %v417, 1.442695
    %v419 = vpow.pop %v418
    %v420 = vadd.f32 %v419, 1.0
    %v421 = vrcp.pop %v420
    %v422 = vmul.f32 %v420, %v421
    %v423 = vsub.f32 1.0, %v422
    %v424 = vmul.f32 %v421, %v423
    %v425 = vadd.f32 %v421, %v424
    %vm426 = vweird.f32 %v420
    %vm427 = vweird.f32 %v421
    %vm428 = vmor %vm426, %vm427
    %v429 = vsel %vm428, %v421, %v425
    %v430 = vand.u32 2147483647, %v420
    %vm431 = vcmp.eq.f32.partialorder %v430, 8.507059e+37
    %v432 = vand.u32 %v420, 2147483648
    %v433 = vor.u32 1.1754944e-38, %v432
    %v434 = vsel %vm431, %v433, %v429
    %v435 = vmul.f32 1.0, %v434
    %v436 = vtanh.pop %v415
    %v437 = vmul.f32 %v435, %v309
    %439 = vrot.lane.b32.xlu0 %v436, 80
    %v440 = vpop.permute.xlu0 %439
    %v442 = vmul.f32 %v435, %v440
    %444 = vrot.lane.b32.xlu0 %v442, 16
    %v445 = vpop.permute.xlu0 %444
    %v447 = vadd.f32 %v437, %v445
    %v448 = vtanh.pop %v447
    %450 = vrot.lane.b32.xlu0 %v448, 16
    %v451 = vpop.permute.xlu0 %450
    %v453 = vmul.f32 %v435, %v451
    %v454 = vmul.f32 %v453, 1.442695
    %v455 = vpow.pop %v454
    %v456 = vadd.f32 %v318, %v455
    %s457 = scalar_lea.vmem %s0, 6
    %v458 = vld [vmem:[%s457] sm:$0x3]
    %459 = vrot.lane.b32.xlu0 %v384, 107
    %v460 = vpop.permute.xlu0 %459
    %v462 = vsel %vm38, %v458, %v460
    %v464 = vsel %vm43, %v462, 0
    %466 = vmatpush.msra.mxu0 0.0
    %467 = vmatpush.msra.mxu0 0.0
    %468 = vmatpush.msra.mxu0 0.0
    %469 = vmatpush.msra.mxu0 0.0
    %470 = vmatpush.msra.mxu0 0.0
    %471 = vmatpush.msra.mxu0 0.0
    %472 = vmatpush.msra.mxu0 0.0
    %473 = vmatpush.msra.mxu0 0.0
    %474 = vmatpush.msra.mxu0 0.0
    %475 = vmatpush.msra.mxu0 0.0
    %476 = vmatpush.msra.mxu0 0.0
    %477 = vmatpush.msra.mxu0 0.0
    %478 = vmatpush.msra.mxu0 %v49
    %479 = vmatpush.msra.mxu0 %v29
    %480 = vmatpush.msra.mxu0 %v28
    %481 = vmatpush.msra.mxu0 %v27
    %482 = vmatmul.f32.gmra.mxu0 %v464
    %v483 = vpop.f32.mrf.mxu0
    %v484 = vadd.f32 %v41, %v483
    %485 = vdwg.mxu0
    %v486 = vxor.u32 %v484, 2147483648
    %v487 = vmul.f32 %v486, 1.442695
    %v488 = vpow.pop %v487
    %v489 = vadd.f32 %v488, 1.0
    %v490 = vrcp.pop %v489
    %v491 = vmul.f32 %v489, %v490
    %v492 = vsub.f32 1.0, %v491
    %v493 = vmul.f32 %v490, %v492
    %v494 = vadd.f32 %v490, %v493
    %vm495 = vweird.f32 %v489
    %vm496 = vweird.f32 %v490
    %vm497 = vmor %vm495, %vm496
    %v498 = vsel %vm497, %v490, %v494
    %v499 = vand.u32 2147483647, %v489
    %vm500 = vcmp.eq.f32.partialorder %v499, 8.507059e+37
    %v501 = vand.u32 %v489, 2147483648
    %v502 = vor.u32 1.1754944e-38, %v501
    %v503 = vsel %vm500, %v502, %v498
    %v504 = vmul.f32 1.0, %v503
    %v505 = vtanh.pop %v484
    %v506 = vmul.f32 %v504, %v378
    %508 = vrot.lane.b32.xlu0 %v505, 80
    %v509 = vpop.permute.xlu0 %508
    %v511 = vmul.f32 %v504, %v509
    %513 = vrot.lane.b32.xlu0 %v511, 16
    %v514 = vpop.permute.xlu0 %513
    %v516 = vadd.f32 %v506, %v514
    %v517 = vtanh.pop %v516
    %519 = vrot.lane.b32.xlu0 %v517, 16
    %v520 = vpop.permute.xlu0 %519
    %v522 = vmul.f32 %v504, %v520
    %524 = vrot.lane.b32.xlu0 %v522, 96
    %v525 = vpop.permute.xlu0 %524
    %528 = vrot.lane.b32.xlu0 %v453, 112
    %v529 = vpop.permute.xlu0 %528
    %v531 = vsel %vm112, %v525, %v529
    %v533 = vsel %vm117, %v531, 0
    %535 = vmatpush.msra.mxu0 0.0
    %536 = vmatpush.msra.mxu0 0.0
    %537 = vmatpush.msra.mxu0 0.0
    %538 = vmatpush.msra.mxu0 0.0
    %539 = vmatpush.msra.mxu0 0.0
    %540 = vmatpush.msra.mxu0 0.0
    %541 = vmatpush.msra.mxu0 0.0
    %542 = vmatpush.msra.mxu0 0.0
    %543 = vmatpush.msra.mxu0 0.0
    %544 = vmatpush.msra.mxu0 0.0
    %545 = vmatpush.msra.mxu0 0.0
    %546 = vmatpush.msra.mxu0 0.0
    %547 = vmatpush.msra.mxu0 %v35
    %548 = vmatpush.msra.mxu0 %v34
    %549 = vmatpush.msra.mxu0 %v33
    %550 = vmatpush.msra.mxu0 %v32
    %551 = vmatmul.f32.gmra.mxu0 %v533
    %v552 = vpop.f32.mrf.mxu0
    %v553 = vadd.f32 %v115, %v552
    %554 = vdwg.mxu0
    %v555 = vxor.u32 %v553, 2147483648
    %v556 = vmul.f32 %v555, 1.442695
    %v557 = vpow.pop %v556
    %v558 = vadd.f32 %v557, 1.0
    %v559 = vrcp.pop %v558
    %v560 = vmul.f32 %v558, %v559
    %v561 = vsub.f32 1.0, %v560
    %v562 = vmul.f32 %v559, %v561
    %v563 = vadd.f32 %v559, %v562
    %vm564 = vweird.f32 %v558
    %vm565 = vweird.f32 %v559
    %vm566 = vmor %vm564, %vm565
    %v567 = vsel %vm566, %v559, %v563
    %v568 = vand.u32 2147483647, %v558
    %vm569 = vcmp.eq.f32.partialorder %v568, 8.507059e+37
    %v570 = vand.u32 %v558, 2147483648
    %v571 = vor.u32 1.1754944e-38, %v570
    %v572 = vsel %vm569, %v571, %v567
    %v573 = vmul.f32 1.0, %v572
    %v574 = vtanh.pop %v553
    %v575 = vmul.f32 %v573, %v447
    %577 = vrot.lane.b32.xlu0 %v574, 80
    %v578 = vpop.permute.xlu0 %577
    %v580 = vmul.f32 %v573, %v578
    %582 = vrot.lane.b32.xlu0 %v580, 16
    %v583 = vpop.permute.xlu0 %582
    %v585 = vadd.f32 %v575, %v583
    %v586 = vtanh.pop %v585
    %588 = vrot.lane.b32.xlu0 %v586, 16
    %v589 = vpop.permute.xlu0 %588
    %v591 = vmul.f32 %v573, %v589
    %v592 = vmul.f32 %v591, 1.442695
    %v593 = vpow.pop %v592
    %v594 = vadd.f32 %v456, %v593
    %s595 = scalar_lea.vmem %s0, 8
    %v596 = vld [vmem:[%s595] sm:$0x3]
    %597 = vrot.lane.b32.xlu0 %v522, 107
    %v598 = vpop.permute.xlu0 %597
    %v600 = vsel %vm38, %v596, %v598
    %v602 = vsel %vm43, %v600, 0
    %604 = vmatpush.msra.mxu0 0.0
    %605 = vmatpush.msra.mxu0 0.0
    %606 = vmatpush.msra.mxu0 0.0
    %607 = vmatpush.msra.mxu0 0.0
    %608 = vmatpush.msra.mxu0 0.0
    %609 = vmatpush.msra.mxu0 0.0
    %610 = vmatpush.msra.mxu0 0.0
    %611 = vmatpush.msra.mxu0 0.0
    %612 = vmatpush.msra.mxu0 0.0
    %613 = vmatpush.msra.mxu0 0.0
    %614 = vmatpush.msra.mxu0 0.0
    %615 = vmatpush.msra.mxu0 0.0
    %616 = vmatpush.msra.mxu0 %v49
    %617 = vmatpush.msra.mxu0 %v29
    %618 = vmatpush.msra.mxu0 %v28
    %619 = vmatpush.msra.mxu0 %v27
    %620 = vmatmul.f32.gmra.mxu0 %v602
    %v621 = vpop.f32.mrf.mxu0
    %v622 = vadd.f32 %v41, %v621
    %623 = vdwg.mxu0
    %v624 = vxor.u32 %v622, 2147483648
    %v625 = vmul.f32 %v624, 1.442695
    %v626 = vpow.pop %v625
    %v627 = vadd.f32 %v626, 1.0
    %v628 = vrcp.pop %v627
    %v629 = vmul.f32 %v627, %v628
    %v630 = vsub.f32 1.0, %v629
    %v631 = vmul.f32 %v628, %v630
    %v632 = vadd.f32 %v628, %v631
    %vm633 = vweird.f32 %v627
    %vm634 = vweird.f32 %v628
    %vm635 = vmor %vm633, %vm634
    %v636 = vsel %vm635, %v628, %v632
    %v637 = vand.u32 2147483647, %v627
    %vm638 = vcmp.eq.f32.partialorder %v637, 8.507059e+37
    %v639 = vand.u32 %v627, 2147483648
    %v640 = vor.u32 1.1754944e-38, %v639
    %v641 = vsel %vm638, %v640, %v636
    %v642 = vmul.f32 1.0, %v641
    %v643 = vtanh.pop %v622
    %v644 = vmul.f32 %v642, %v516
    %646 = vrot.lane.b32.xlu0 %v643, 80
    %v647 = vpop.permute.xlu0 %646
    %v649 = vmul.f32 %v642, %v647
    %651 = vrot.lane.b32.xlu0 %v649, 16
    %v652 = vpop.permute.xlu0 %651
    %v654 = vadd.f32 %v644, %v652
    %v655 = vtanh.pop %v654
    %657 = vrot.lane.b32.xlu0 %v655, 16
    %v658 = vpop.permute.xlu0 %657
    %v660 = vmul.f32 %v642, %v658
    %662 = vrot.lane.b32.xlu0 %v660, 96
    %v663 = vpop.permute.xlu0 %662
    %666 = vrot.lane.b32.xlu0 %v591, 112
    %v667 = vpop.permute.xlu0 %666
    %v669 = vsel %vm112, %v663, %v667
    %v671 = vsel %vm117, %v669, 0
    %673 = vmatpush.msra.mxu0 0.0
    %674 = vmatpush.msra.mxu0 0.0
    %675 = vmatpush.msra.mxu0 0.0
    %676 = vmatpush.msra.mxu0 0.0
    %677 = vmatpush.msra.mxu0 0.0
    %678 = vmatpush.msra.mxu0 0.0
    %679 = vmatpush.msra.mxu0 0.0
    %680 = vmatpush.msra.mxu0 0.0
    %681 = vmatpush.msra.mxu0 0.0
    %682 = vmatpush.msra.mxu0 0.0
    %683 = vmatpush.msra.mxu0 0.0
    %684 = vmatpush.msra.mxu0 0.0
    %685 = vmatpush.msra.mxu0 %v35
    %686 = vmatpush.msra.mxu0 %v34
    %687 = vmatpush.msra.mxu0 %v33
    %688 = vmatpush.msra.mxu0 %v32
    %689 = vmatmul.f32.gmra.mxu0 %v671
    %v690 = vpop.f32.mrf.mxu0
    %v691 = vadd.f32 %v115, %v690
    %692 = vdwg.mxu0
    %v693 = vxor.u32 %v691, 2147483648
    %v694 = vmul.f32 %v693, 1.442695
    %v695 = vpow.pop %v694
    %v696 = vadd.f32 %v695, 1.0
    %v697 = vrcp.pop %v696
    %v698 = vmul.f32 %v696, %v697
    %v699 = vsub.f32 1.0, %v698
    %v700 = vmul.f32 %v697, %v699
    %v701 = vadd.f32 %v697, %v700
    %vm702 = vweird.f32 %v696
    %vm703 = vweird.f32 %v697
    %vm704 = vmor %vm702, %vm703
    %v705 = vsel %vm704, %v697, %v701
    %v706 = vand.u32 2147483647, %v696
    %vm707 = vcmp.eq.f32.partialorder %v706, 8.507059e+37
    %v708 = vand.u32 %v696, 2147483648
    %v709 = vor.u32 1.1754944e-38, %v708
    %v710 = vsel %vm707, %v709, %v705
    %v711 = vmul.f32 1.0, %v710
    %v712 = vtanh.pop %v691
    %v713 = vmul.f32 %v711, %v585
    %715 = vrot.lane.b32.xlu0 %v712, 80
    %v716 = vpop.permute.xlu0 %715
    %v718 = vmul.f32 %v711, %v716
    %720 = vrot.lane.b32.xlu0 %v718, 16
    %v721 = vpop.permute.xlu0 %720
    %v723 = vadd.f32 %v713, %v721
    %v724 = vtanh.pop %v723
    %726 = vrot.lane.b32.xlu0 %v724, 16
    %v727 = vpop.permute.xlu0 %726
    %v729 = vmul.f32 %v711, %v727
    %v730 = vmul.f32 %v729, 1.442695
    %v731 = vpow.pop %v730
    %v732 = vadd.f32 %v594, %v731
    %s733 = scalar_lea.vmem %s0, 10
    %v734 = vld [vmem:[%s733] sm:$0x3]
    %735 = vrot.lane.b32.xlu0 %v660, 107
    %v736 = vpop.permute.xlu0 %735
    %v738 = vsel %vm38, %v734, %v736
    %v740 = vsel %vm43, %v738, 0
    %742 = vmatpush.msra.mxu0 0.0
    %743 = vmatpush.msra.mxu0 0.0
    %744 = vmatpush.msra.mxu0 0.0
    %745 = vmatpush.msra.mxu0 0.0
    %746 = vmatpush.msra.mxu0 0.0
    %747 = vmatpush.msra.mxu0 0.0
    %748 = vmatpush.msra.mxu0 0.0
    %749 = vmatpush.msra.mxu0 0.0
    %750 = vmatpush.msra.mxu0 0.0
    %751 = vmatpush.msra.mxu0 0.0
    %752 = vmatpush.msra.mxu0 0.0
    %753 = vmatpush.msra.mxu0 0.0
    %754 = vmatpush.msra.mxu0 %v49
    %755 = vmatpush.msra.mxu0 %v29
    %756 = vmatpush.msra.mxu0 %v28
    %757 = vmatpush.msra.mxu0 %v27
    %758 = vmatmul.f32.gmra.mxu0 %v740
    %v759 = vpop.f32.mrf.mxu0
    %v760 = vadd.f32 %v41, %v759
    %761 = vdwg.mxu0
    %v762 = vxor.u32 %v760, 2147483648
    %v763 = vmul.f32 %v762, 1.442695
    %v764 = vpow.pop %v763
    %v765 = vadd.f32 %v764, 1.0
    %v766 = vrcp.pop %v765
    %v767 = vmul.f32 %v765, %v766
    %v768 = vsub.f32 1.0, %v767
    %v769 = vmul.f32 %v766, %v768
    %v770 = vadd.f32 %v766, %v769
    %vm771 = vweird.f32 %v765
    %vm772 = vweird.f32 %v766
    %vm773 = vmor %vm771, %vm772
    %v774 = vsel %vm773, %v766, %v770
    %v775 = vand.u32 2147483647, %v765
    %vm776 = vcmp.eq.f32.partialorder %v775, 8.507059e+37
    %v777 = vand.u32 %v765, 2147483648
    %v778 = vor.u32 1.1754944e-38, %v777
    %v779 = vsel %vm776, %v778, %v774
    %v780 = vmul.f32 1.0, %v779
    %v781 = vtanh.pop %v760
    %v782 = vmul.f32 %v780, %v654
    %784 = vrot.lane.b32.xlu0 %v781, 80
    %v785 = vpop.permute.xlu0 %784
    %v787 = vmul.f32 %v780, %v785
    %789 = vrot.lane.b32.xlu0 %v787, 16
    %v790 = vpop.permute.xlu0 %789
    %v792 = vadd.f32 %v782, %v790
    %v793 = vtanh.pop %v792
    %795 = vrot.lane.b32.xlu0 %v793, 16
    %v796 = vpop.permute.xlu0 %795
    %v798 = vmul.f32 %v780, %v796
    %800 = vrot.lane.b32.xlu0 %v798, 96
    %v801 = vpop.permute.xlu0 %800
    %804 = vrot.lane.b32.xlu0 %v729, 112
    %v805 = vpop.permute.xlu0 %804
    %v807 = vsel %vm112, %v801, %v805
    %v809 = vsel %vm117, %v807, 0
    %811 = vmatpush.msra.mxu0 0.0
    %812 = vmatpush.msra.mxu0 0.0
    %813 = vmatpush.msra.mxu0 0.0
    %814 = vmatpush.msra.mxu0 0.0
    %815 = vmatpush.msra.mxu0 0.0
    %816 = vmatpush.msra.mxu0 0.0
    %817 = vmatpush.msra.mxu0 0.0
    %818 = vmatpush.msra.mxu0 0.0
    %819 = vmatpush.msra.mxu0 0.0
    %820 = vmatpush.msra.mxu0 0.0
    %821 = vmatpush.msra.mxu0 0.0
    %822 = vmatpush.msra.mxu0 0.0
    %823 = vmatpush.msra.mxu0 %v35
    %824 = vmatpush.msra.mxu0 %v34
    %825 = vmatpush.msra.mxu0 %v33
    %826 = vmatpush.msra.mxu0 %v32
    %827 = vmatmul.f32.gmra.mxu0 %v809
    %v828 = vpop.f32.mrf.mxu0
    %v829 = vadd.f32 %v115, %v828
    %830 = vdwg.mxu0
    %v831 = vxor.u32 %v829, 2147483648
    %v832 = vmul.f32 %v831, 1.442695
    %v833 = vpow.pop %v832
    %v834 = vadd.f32 %v833, 1.0
    %v835 = vrcp.pop %v834
    %v836 = vmul.f32 %v834, %v835
    %v837 = vsub.f32 1.0, %v836
    %v838 = vmul.f32 %v835, %v837
    %v839 = vadd.f32 %v835, %v838
    %vm840 = vweird.f32 %v834
    %vm841 = vweird.f32 %v835
    %vm842 = vmor %vm840, %vm841
    %v843 = vsel %vm842, %v835, %v839
    %v844 = vand.u32 2147483647, %v834
    %vm845 = vcmp.eq.f32.partialorder %v844, 8.507059e+37
    %v846 = vand.u32 %v834, 2147483648
    %v847 = vor.u32 1.1754944e-38, %v846
    %v848 = vsel %vm845, %v847, %v843
    %v849 = vmul.f32 1.0, %v848
    %v850 = vtanh.pop %v829
    %v851 = vmul.f32 %v849, %v723
    %853 = vrot.lane.b32.xlu0 %v850, 80
    %v854 = vpop.permute.xlu0 %853
    %v856 = vmul.f32 %v849, %v854
    %858 = vrot.lane.b32.xlu0 %v856, 16
    %v859 = vpop.permute.xlu0 %858
    %v861 = vadd.f32 %v851, %v859
    %v862 = vtanh.pop %v861
    %864 = vrot.lane.b32.xlu0 %v862, 16
    %v865 = vpop.permute.xlu0 %864
    %v867 = vmul.f32 %v849, %v865
    %v868 = vmul.f32 %v867, 1.442695
    %v869 = vpow.pop %v868
    %v870 = vadd.f32 %v732, %v869
    %s871 = scalar_lea.vmem %s0, 12
    %v872 = vld [vmem:[%s871] sm:$0x3]
    %873 = vrot.lane.b32.xlu0 %v798, 107
    %v874 = vpop.permute.xlu0 %873
    %v876 = vsel %vm38, %v872, %v874
    %v878 = vsel %vm43, %v876, 0
    %880 = vmatpush.msra.mxu0 0.0
    %881 = vmatpush.msra.mxu0 0.0
    %882 = vmatpush.msra.mxu0 0.0
    %883 = vmatpush.msra.mxu0 0.0
    %884 = vmatpush.msra.mxu0 0.0
    %885 = vmatpush.msra.mxu0 0.0
    %886 = vmatpush.msra.mxu0 0.0
    %887 = vmatpush.msra.mxu0 0.0
    %888 = vmatpush.msra.mxu0 0.0
    %889 = vmatpush.msra.mxu0 0.0
    %890 = vmatpush.msra.mxu0 0.0
    %891 = vmatpush.msra.mxu0 0.0
    %892 = vmatpush.msra.mxu0 %v49
    %893 = vmatpush.msra.mxu0 %v29
    %894 = vmatpush.msra.mxu0 %v28
    %895 = vmatpush.msra.mxu0 %v27
    %896 = vmatmul.f32.gmra.mxu0 %v878
    %v897 = vpop.f32.mrf.mxu0
    %v898 = vadd.f32 %v41, %v897
    %899 = vdwg.mxu0
    %v900 = vxor.u32 %v898, 2147483648
    %v901 = vmul.f32 %v900, 1.442695
    %v902 = vpow.pop %v901
    %v903 = vadd.f32 %v902, 1.0
    %v904 = vrcp.pop %v903
    %v905 = vmul.f32 %v903, %v904
    %v906 = vsub.f32 1.0, %v905
    %v907 = vmul.f32 %v904, %v906
    %v908 = vadd.f32 %v904, %v907
    %vm909 = vweird.f32 %v903
    %vm910 = vweird.f32 %v904
    %vm911 = vmor %vm909, %vm910
    %v912 = vsel %vm911, %v904, %v908
    %v913 = vand.u32 2147483647, %v903
    %vm914 = vcmp.eq.f32.partialorder %v913, 8.507059e+37
    %v915 = vand.u32 %v903, 2147483648
    %v916 = vor.u32 1.1754944e-38, %v915
    %v917 = vsel %vm914, %v916, %v912
    %v918 = vmul.f32 1.0, %v917
    %v919 = vtanh.pop %v898
    %v920 = vmul.f32 %v918, %v792
    %922 = vrot.lane.b32.xlu0 %v919, 80
    %v923 = vpop.permute.xlu0 %922
    %v925 = vmul.f32 %v918, %v923
    %927 = vrot.lane.b32.xlu0 %v925, 16
    %v928 = vpop.permute.xlu0 %927
    %v930 = vadd.f32 %v920, %v928
    %v931 = vtanh.pop %v930
    %933 = vrot.lane.b32.xlu0 %v931, 16
    %v934 = vpop.permute.xlu0 %933
    %v936 = vmul.f32 %v918, %v934
    %938 = vrot.lane.b32.xlu0 %v936, 96
    %v939 = vpop.permute.xlu0 %938
    %942 = vrot.lane.b32.xlu0 %v867, 112
    %v943 = vpop.permute.xlu0 %942
    %v945 = vsel %vm112, %v939, %v943
    %v947 = vsel %vm117, %v945, 0
    %949 = vmatpush.msra.mxu0 0.0
    %950 = vmatpush.msra.mxu0 0.0
    %951 = vmatpush.msra.mxu0 0.0
    %952 = vmatpush.msra.mxu0 0.0
    %953 = vmatpush.msra.mxu0 0.0
    %954 = vmatpush.msra.mxu0 0.0
    %955 = vmatpush.msra.mxu0 0.0
    %956 = vmatpush.msra.mxu0 0.0
    %957 = vmatpush.msra.mxu0 0.0
    %958 = vmatpush.msra.mxu0 0.0
    %959 = vmatpush.msra.mxu0 0.0
    %960 = vmatpush.msra.mxu0 0.0
    %961 = vmatpush.msra.mxu0 %v35
    %962 = vmatpush.msra.mxu0 %v34
    %963 = vmatpush.msra.mxu0 %v33
    %964 = vmatpush.msra.mxu0 %v32
    %965 = vmatmul.f32.gmra.mxu0 %v947
    %v966 = vpop.f32.mrf.mxu0
    %v967 = vadd.f32 %v115, %v966
    %968 = vdwg.mxu0
    %v969 = vxor.u32 %v967, 2147483648
    %v970 = vmul.f32 %v969, 1.442695
    %v971 = vpow.pop %v970
    %v972 = vadd.f32 %v971, 1.0
    %v973 = vrcp.pop %v972
    %v974 = vmul.f32 %v972, %v973
    %v975 = vsub.f32 1.0, %v974
    %v976 = vmul.f32 %v973, %v975
    %v977 = vadd.f32 %v973, %v976
    %vm978 = vweird.f32 %v972
    %vm979 = vweird.f32 %v973
    %vm980 = vmor %vm978, %vm979
    %v981 = vsel %vm980, %v973, %v977
    %v982 = vand.u32 2147483647, %v972
    %vm983 = vcmp.eq.f32.partialorder %v982, 8.507059e+37
    %v984 = vand.u32 %v972, 2147483648
    %v985 = vor.u32 1.1754944e-38, %v984
    %v986 = vsel %vm983, %v985, %v981
    %v987 = vmul.f32 1.0, %v986
    %v988 = vtanh.pop %v967
    %v989 = vmul.f32 %v987, %v861
    %991 = vrot.lane.b32.xlu0 %v988, 80
    %v992 = vpop.permute.xlu0 %991
    %v994 = vmul.f32 %v987, %v992
    %996 = vrot.lane.b32.xlu0 %v994, 16
    %v997 = vpop.permute.xlu0 %996
    %v999 = vadd.f32 %v989, %v997
    %v1000 = vtanh.pop %v999
    %1002 = vrot.lane.b32.xlu0 %v1000, 16
    %v1003 = vpop.permute.xlu0 %1002
    %v1005 = vmul.f32 %v987, %v1003
    %v1006 = vmul.f32 %v1005, 1.442695
    %v1007 = vpow.pop %v1006
    %v1008 = vadd.f32 %v870, %v1007
    %s1009 = scalar_lea.vmem %s0, 14
    %v1010 = vld [vmem:[%s1009] sm:$0x3]
    %1011 = vrot.lane.b32.xlu0 %v936, 107
    %v1012 = vpop.permute.xlu0 %1011
    %v1014 = vsel %vm38, %v1010, %v1012
    %v1016 = vsel %vm43, %v1014, 0
    %1018 = vmatpush.msra.mxu0 0.0
    %1019 = vmatpush.msra.mxu0 0.0
    %1020 = vmatpush.msra.mxu0 0.0
    %1021 = vmatpush.msra.mxu0 0.0
    %1022 = vmatpush.msra.mxu0 0.0
    %1023 = vmatpush.msra.mxu0 0.0
    %1024 = vmatpush.msra.mxu0 0.0
    %1025 = vmatpush.msra.mxu0 0.0
    %1026 = vmatpush.msra.mxu0 0.0
    %1027 = vmatpush.msra.mxu0 0.0
    %1028 = vmatpush.msra.mxu0 0.0
    %1029 = vmatpush.msra.mxu0 0.0
    %1030 = vmatpush.msra.mxu0 %v49
    %1031 = vmatpush.msra.mxu0 %v29
    %1032 = vmatpush.msra.mxu0 %v28
    %1033 = vmatpush.msra.mxu0 %v27
    %1034 = vmatmul.f32.gmra.mxu0 %v1016
    %v1035 = vpop.f32.mrf.mxu0
    %v1036 = vadd.f32 %v41, %v1035
    %1037 = vdwg.mxu0
    %v1038 = vxor.u32 %v1036, 2147483648
    %v1039 = vmul.f32 %v1038, 1.442695
    %v1040 = vpow.pop %v1039
    %v1041 = vadd.f32 %v1040, 1.0
    %v1042 = vrcp.pop %v1041
    %v1043 = vmul.f32 %v1041, %v1042
    %v1044 = vsub.f32 1.0, %v1043
    %v1045 = vmul.f32 %v1042, %v1044
    %v1046 = vadd.f32 %v1042, %v1045
    %vm1047 = vweird.f32 %v1041
    %vm1048 = vweird.f32 %v1042
    %vm1049 = vmor %vm1047, %vm1048
    %v1050 = vsel %vm1049, %v1042, %v1046
    %v1051 = vand.u32 2147483647, %v1041
    %vm1052 = vcmp.eq.f32.partialorder %v1051, 8.507059e+37
    %v1053 = vand.u32 %v1041, 2147483648
    %v1054 = vor.u32 1.1754944e-38, %v1053
    %v1055 = vsel %vm1052, %v1054, %v1050
    %v1056 = vmul.f32 1.0, %v1055
    %v1057 = vtanh.pop %v1036
    %v1058 = vmul.f32 %v1056, %v930
    %1060 = vrot.lane.b32.xlu0 %v1057, 80
    %v1061 = vpop.permute.xlu0 %1060
    %v1063 = vmul.f32 %v1056, %v1061
    %1065 = vrot.lane.b32.xlu0 %v1063, 16
    %v1066 = vpop.permute.xlu0 %1065
    %v1068 = vadd.f32 %v1058, %v1066
    %v1069 = vtanh.pop %v1068
    %1071 = vrot.lane.b32.xlu0 %v1069, 16
    %v1072 = vpop.permute.xlu0 %1071
    %v1074 = vmul.f32 %v1056, %v1072
    %1076 = vrot.lane.b32.xlu0 %v1074, 96
    %v1077 = vpop.permute.xlu0 %1076
    %1080 = vrot.lane.b32.xlu0 %v1005, 112
    %v1081 = vpop.permute.xlu0 %1080
    %v1083 = vsel %vm112, %v1077, %v1081
    %v1085 = vsel %vm117, %v1083, 0
    %1087 = vmatpush.msra.mxu0 0.0
    %1088 = vmatpush.msra.mxu0 0.0
    %1089 = vmatpush.msra.mxu0 0.0
    %1090 = vmatpush.msra.mxu0 0.0
    %1091 = vmatpush.msra.mxu0 0.0
    %1092 = vmatpush.msra.mxu0 0.0
    %1093 = vmatpush.msra.mxu0 0.0
    %1094 = vmatpush.msra.mxu0 0.0
    %1095 = vmatpush.msra.mxu0 0.0
    %1096 = vmatpush.msra.mxu0 0.0
    %1097 = vmatpush.msra.mxu0 0.0
    %1098 = vmatpush.msra.mxu0 0.0
    %1099 = vmatpush.msra.mxu0 %v35
    %1100 = vmatpush.msra.mxu0 %v34
    %1101 = vmatpush.msra.mxu0 %v33
    %1102 = vmatpush.msra.mxu0 %v32
    %1103 = vmatmul.f32.gmra.mxu0 %v1085
    %v1104 = vpop.f32.mrf.mxu0
    %v1105 = vadd.f32 %v115, %v1104
    %1106 = vdwg.mxu0
    %v1107 = vxor.u32 %v1105, 2147483648
    %v1108 = vmul.f32 %v1107, 1.442695
    %v1109 = vpow.pop %v1108
    %v1110 = vadd.f32 %v1109, 1.0
    %v1111 = vrcp.pop %v1110
    %v1112 = vmul.f32 %v1110, %v1111
    %v1113 = vsub.f32 1.0, %v1112
    %v1114 = vmul.f32 %v1111, %v1113
    %v1115 = vadd.f32 %v1111, %v1114
    %vm1116 = vweird.f32 %v1110
    %vm1117 = vweird.f32 %v1111
    %vm1118 = vmor %vm1116, %vm1117
    %v1119 = vsel %vm1118, %v1111, %v1115
    %v1120 = vand.u32 2147483647, %v1110
    %vm1121 = vcmp.eq.f32.partialorder %v1120, 8.507059e+37
    %v1122 = vand.u32 %v1110, 2147483648
    %v1123 = vor.u32 1.1754944e-38, %v1122
    %v1124 = vsel %vm1121, %v1123, %v1119
    %v1125 = vmul.f32 1.0, %v1124
    %v1126 = vtanh.pop %v1105
    %v1127 = vmul.f32 %v1125, %v999
    %1129 = vrot.lane.b32.xlu0 %v1126, 80
    %v1130 = vpop.permute.xlu0 %1129
    %v1132 = vmul.f32 %v1125, %v1130
    %1134 = vrot.lane.b32.xlu0 %v1132, 16
    %v1135 = vpop.permute.xlu0 %1134
    %v1137 = vadd.f32 %v1127, %v1135
    %v1138 = vtanh.pop %v1137
    %1140 = vrot.lane.b32.xlu0 %v1138, 16
    %v1141 = vpop.permute.xlu0 %1140
    %v1143 = vmul.f32 %v1125, %v1141
    %v1144 = vmul.f32 %v1143, 1.442695
    %v1145 = vpow.pop %v1144
    %v1146 = vadd.f32 %v1008, %v1145
    %v1147 = vrcp.pop %v1146
    %v1148 = vmul.f32 %v1146, %v1147
    %v1149 = vsub.f32 1.0, %v1148
    %v1150 = vmul.f32 %v1147, %v1149
    %v1151 = vadd.f32 %v1147, %v1150
    %vm1152 = vweird.f32 %v1146
    %vm1153 = vweird.f32 %v1147
    %vm1154 = vmor %vm1152, %vm1153
    %v1155 = vsel %vm1154, %v1147, %v1151
    %v1156 = vand.u32 2147483647, %v1146
    %vm1157 = vcmp.eq.f32.partialorder %v1156, 8.507059e+37
    %v1158 = vand.u32 %v1146, 2147483648
    %v1159 = vor.u32 1.1754944e-38, %v1158
    %v1160 = vsel %vm1157, %v1159, %v1155
    %v1161 = vmul.f32 %v1145, %v1160
    %v1162 = vld [vmem:[%s5] sm:$0xff]
    %v1163 = vld [vmem:[%s5 + $0x8] sm:$0xff]
    %v1164 = vld [vmem:[%s6] sm:$0x1]
    %v1166 = vperm.slane %v1164, 0
    %1169 = vrot.lane.b32.xlu0 %v1161, 96
    %v1170 = vpop.permute.xlu0 %1169
    %v1171 = vsel %vm112, %v1170, 0
    %1173 = vmatpush.msra.mxu0 0.0
    %1174 = vmatpush.msra.mxu0 0.0
    %1175 = vmatpush.msra.mxu0 0.0
    %1176 = vmatpush.msra.mxu0 0.0
    %1177 = vmatpush.msra.mxu0 0.0
    %1178 = vmatpush.msra.mxu0 0.0
    %1179 = vmatpush.msra.mxu0 0.0
    %1180 = vmatpush.msra.mxu0 0.0
    %1181 = vmatpush.msra.mxu0 0.0
    %1182 = vmatpush.msra.mxu0 0.0
    %1183 = vmatpush.msra.mxu0 0.0
    %1184 = vmatpush.msra.mxu0 0.0
    %1185 = vmatpush.msra.mxu0 0.0
    %1186 = vmatpush.msra.mxu0 0.0
    %1187 = vmatpush.msra.mxu0 %v1163
    %1188 = vmatpush.msra.mxu0 %v1162
    %1189 = vmatmul.f32.gmra.mxu0 %v1171
    %v1190 = vpop.f32.mrf.mxu0
    %v1191 = vadd.f32 %v1166, %v1190
    %1192 = vdwg.mxu0
    %vm1193 = vcmask 17408
    %v1194 = vsel %vm1193, %v1191, -inf
    %1195 = vmax.xlane.f32.xlu0 %v1194
    %v1196 = vpop.xlane.xlu0 %1195
    %v1197 = vsub.f32 %v1191, %v1196
    %v1198 = vmul.f32 %v1197, 1.442695
    %v1199 = vpow.pop %v1198
    %v1200 = vsel %vm1193, %v1199, 0.0
    %1201 = vadd.xlane.f32.xlu0 %v1200
    %v1202 = vpop.xlane.xlu0 %1201
    %v1203 = vrcp.pop %v1202
    %v1204 = vmul.f32 %v1202, %v1203
    %v1205 = vsub.f32 1.0, %v1204
    %v1206 = vmul.f32 %v1203, %v1205
    %v1207 = vadd.f32 %v1203, %v1206
    %vm1208 = vweird.f32 %v1202
    %vm1209 = vweird.f32 %v1203
    %vm1210 = vmor %vm1208, %vm1209
    %v1211 = vsel %vm1210, %v1203, %v1207
    %v1212 = vand.u32 2147483647, %v1202
    %vm1213 = vcmp.eq.f32.partialorder %v1212, 8.507059e+37
    %v1214 = vand.u32 %v1202, 2147483648
    %v1215 = vor.u32 1.1754944e-38, %v1214
    %v1216 = vsel %vm1213, %v1215, %v1211
    %v1217 = vmul.f32 %v1199, %v1216
    %1218 = vst.msk [vmem:[#allocation2] sm:$0x3] %vm1193, %v1217
    // Predicated region
    $region30: #{rnn_forward.1} parent=1 // pred_check
      _
    $region31: #{rnn_forward.1} parent=1 // pred_check_branch
      %1220 = sbr.rel (0) target = $region33
    $region32: #{rnn_forward.1} parent=1 // pred_region
      %1222 = vsyncadd [#allocation3], 0
      %s1224 = sshll.u32 [#allocation2], 4
      %s1225 = int_to_ptr.vmem [resolvable:$true] %s1224
      %s1226 = sshll.u32 %s7, 4
      %s1227 = int_to_ptr.hbm [resolvable:$true] %s1226
      %1229 = dma.vmem_to_hbm [thread:$0]  %s1225, 32, %s1227, [#allocation3]
    $region33: #{rnn_forward.1} parent=1 // pred_fallthru
      _
    // Predicated region
    $region34: #{rnn_forward.1} parent=1 // pred_check
      _
    $region35: #{rnn_forward.1} parent=1 // pred_check_branch
      %1231 = sbr.rel (0) target = $region37
    $region36: #{rnn_forward.1} parent=1 // pred_region
      %1233 = dma.done [#allocation3], 32
    $region37: #{rnn_forward.1} parent=1 // pred_fallthru
      _
    %1234 = vsyncpa [#allocation3], 1

</llo_original>
